<compile_context>
chip_gen: v6e
topology: v6e:2x2x1
jax: 0.10.0
libtpu: 0.0.40
codegen_flags: <defaults>
</compile_context>

<pallas_src>
import functools

import jax
import jax.numpy as jnp
from jax.experimental import pallas as pl
from jax.experimental.pallas import tpu as pltpu

EPS = 1e-5  # nn.BatchNorm2d default


# ------------------------------ helpers (in-kernel) ------------------------------
def _build_patches(x, img_w, patches_ref):
    """Write the 9 shifted / zero-masked taps of x into the patches scratch.

    x:           (C, H*W) f32, lane-dense (flattened spatial axis on lanes).
    patches_ref: (9*C, H*W) bf16 VMEM scratch. Row block k = (ky, kx) holds
                 x[c, h+ky-1, w+kx-1], zero where the tap falls outside the image
                 (padding_mode='zeros').
    Shifts use pltpu.roll (XLU slot, otherwise idle here); edge masks are cheap
    VPU selects; no jnp.concatenate / padded-copy materialization.
    """
    C, HW = x.shape
    pos = jax.lax.broadcasted_iota(jnp.int32, (C, HW), 1)
    col = pos % img_w  # column index within each image row
    k = 0
    for dy in (-1, 0, 1):
        for dx in (-1, 0, 1):
            if dy == 0 and dx == 0:
                tap = x
            else:
                # out[p] = x[p + dy*W + dx]  (jnp.roll convention: out[i] = x[i-shift])
                shift = (-(dy * img_w + dx)) % HW
                shifted = pltpu.roll(x, shift=shift, axis=1)
                conds = []
                if dx == -1:
                    conds.append(col >= 1)
                elif dx == 1:
                    conds.append(col <= img_w - 2)
                if dy == -1:
                    conds.append(pos >= img_w)
                elif dy == 1:
                    conds.append(pos < HW - img_w)
                valid = conds[0]
                for c in conds[1:]:
                    valid = valid & c
                tap = jnp.where(valid, shifted, 0.0)
            patches_ref[pl.ds(k * C, C), :] = tap.astype(patches_ref.dtype)
            k += 1


def _partial_stats(y):
    """Per-channel partial (sum, sum-of-squares) over this block: (Cout, 2) f32."""
    return jnp.concatenate(
        [jnp.sum(y, axis=1, keepdims=True), jnp.sum(y * y, axis=1, keepdims=True)],
        axis=1)


def _conv(w_ref, patches_ref):
    """Single bf16 MXU matmul with f32 accumulation: (Cout, 9*C) @ (9*C, H*W)."""
    return jnp.dot(w_ref[...].astype(jnp.bfloat16), patches_ref[...],
                   preferred_element_type=jnp.float32)


# --------------------------------- kernels ---------------------------------
def _conv_stats_kernel(x_ref, w_ref, y_ref, st_ref, patches_ref, *, img_w):
    """Block 1: conv3x3 of the raw input + BN1 partial stats."""
    x = x_ref[0].astype(jnp.float32)                 # (Cin, H*W)
    _build_patches(x, img_w, patches_ref)
    y = _conv(w_ref, patches_ref)                    # (Cout, H*W) f32
    st_ref[0] = _partial_stats(y)
    y_ref[0] = y.astype(y_ref.dtype)                 # bf16 inter-stage store


def _bnrelu_conv_stats_kernel(h_ref, sc_ref, sh_ref, w_ref, y_ref, st_ref,
                              patches_ref, *, img_w):
    """Block 2 fused: BN1 (folded per-channel scale/shift) + ReLU, conv3x3, BN2 stats."""
    # Elementwise math in f32 (v5e has no bf16 VALU); per-channel broadcast is
    # per-sublane in this layout.
    h = jnp.maximum(h_ref[0].astype(jnp.float32) * sc_ref[...] + sh_ref[...], 0.0)
    _build_patches(h, img_w, patches_ref)
    y = _conv(w_ref, patches_ref)
    st_ref[0] = _partial_stats(y)
    y_ref[0] = y.astype(y_ref.dtype)


def _bnrelu_kernel(y_ref, sc_ref, sh_ref, o_ref):
    """Final BN2 (folded scale/shift) + ReLU; bf16 in, f32 NCHW-layout out."""
    o_ref[0] = jnp.maximum(y_ref[0].astype(jnp.float32) * sc_ref[...] + sh_ref[...], 0.0)


# ------------------------------ pallas wrappers ------------------------------
def _vmem_limit_bytes():
    # Generation-aware scoped-VMEM budget: ~3/4 of physical, capped at 64 MiB.
    # (v7x: 64 MiB/TC -> 48 MiB; v5e/v6e: 128 MiB -> 64 MiB; defaults are 16/32 MiB.)
    try:
        cap = int(pltpu.get_tpu_info().vmem_capacity_bytes)
    except Exception:  # non-TPU tracing / API drift: fall back to a safe value
        cap = 128 * 1024 * 1024
    return int(min(64 * 1024 * 1024, max(cap, 32 * 1024 * 1024) * 3 // 4))


def _compiler_params():
    return pltpu.CompilerParams(
        dimension_semantics=("parallel",),
        vmem_limit_bytes=_vmem_limit_bytes(),
    )


def _conv1_call(x, w, img_w):
    B, Cin, HW = x.shape
    Cout = w.shape[0]
    kernel = functools.partial(_conv_stats_kernel, img_w=img_w)
    return pl.pallas_call(
        kernel,
        out_shape=(jax.ShapeDtypeStruct((B, Cout, HW), jnp.bfloat16),
                   jax.ShapeDtypeStruct((B, Cout, 2), jnp.float32)),
        grid=(B,),
        in_specs=[
            pl.BlockSpec((1, Cin, HW), lambda i: (i, 0, 0)),
            pl.BlockSpec((Cout, 9 * Cin), lambda i: (0, 0)),   # weight stays resident
        ],
        out_specs=(
            pl.BlockSpec((1, Cout, HW), lambda i: (i, 0, 0)),
            pl.BlockSpec((1, Cout, 2), lambda i: (i, 0, 0)),
        ),
        scratch_shapes=[pltpu.VMEM((9 * Cin, HW), jnp.bfloat16)],
        compiler_params=_compiler_params(),
    )(x, w)


def _conv2_call(y1, sc1, sh1, w, img_w):
    B, C1, HW = y1.shape
    C2 = w.shape[0]
    kernel = functools.partial(_bnrelu_conv_stats_kernel, img_w=img_w)
    return pl.pallas_call(
        kernel,
        out_shape=(jax.ShapeDtypeStruct((B, C2, HW), jnp.bfloat16),
                   jax.ShapeDtypeStruct((B, C2, 2), jnp.float32)),
        grid=(B,),
        in_specs=[
            pl.BlockSpec((1, C1, HW), lambda i: (i, 0, 0)),
            pl.BlockSpec((C1, 1), lambda i: (0, 0)),
            pl.BlockSpec((C1, 1), lambda i: (0, 0)),
            pl.BlockSpec((C2, 9 * C1), lambda i: (0, 0)),
        ],
        out_specs=(
            pl.BlockSpec((1, C2, HW), lambda i: (i, 0, 0)),
            pl.BlockSpec((1, C2, 2), lambda i: (i, 0, 0)),
        ),
        scratch_shapes=[pltpu.VMEM((9 * C1, HW), jnp.bfloat16)],
        compiler_params=_compiler_params(),
    )(y1, sc1, sh1, w)


def _bnrelu_call(y2, sc2, sh2):
    B, C, HW = y2.shape
    return pl.pallas_call(
        _bnrelu_kernel,
        out_shape=jax.ShapeDtypeStruct((B, C, HW), jnp.float32),
        grid=(B,),
        in_specs=[
            pl.BlockSpec((1, C, HW), lambda i: (i, 0, 0)),
            pl.BlockSpec((C, 1), lambda i: (0, 0)),
            pl.BlockSpec((C, 1), lambda i: (0, 0)),
        ],
        out_specs=pl.BlockSpec((1, C, HW), lambda i: (i, 0, 0)),
        compiler_params=_compiler_params(),
    )(y2, sc2, sh2)


# ------------------------------- JAX-side glue -------------------------------
def _bn_fold(stats, gamma, beta, n):
    """Reduce per-step partial stats and fold BN into per-channel (C,1) scale/shift."""
    tot = jnp.sum(stats, axis=0)                       # (C, 2)
    mean = tot[:, 0] / n
    var = jnp.maximum(tot[:, 1] / n - mean * mean, 0.0)
    scale = gamma.astype(jnp.float32) * jax.lax.rsqrt(var + EPS)
    shift = beta.astype(jnp.float32) - mean * scale
    return scale[:, None], shift[:, None]              # broadcast per-sublane in-kernel


def _torch_w_to_mat(w_oihw):
    """PyTorch Conv2d weight (Cout, Cin, 3, 3) -> (Cout, 9*Cin), col = (ky, kx, cin)."""
    Cout, Cin, _, _ = w_oihw.shape
    return jnp.transpose(w_oihw, (0, 2, 3, 1)).reshape(Cout, 9 * Cin).astype(jnp.float32)


def double_conv(x_nchw, params):
    """DoubleConv forward (training-mode BatchNorm). x: (B,Cin,H,W) -> (B,Cout,H,W)."""
    B, Cin, H, W = x_nchw.shape
    Cout = params["w1"].shape[0]
    HW = H * W
    n = B * HW
    # Pure reshape (no transpose / extra HBM pass); flattened spatial axis is the
    # lane axis everywhere, and conv outputs come out directly in NCHW layout.
    x = x_nchw.reshape(B, Cin, HW).astype(jnp.float32)

    w1 = _torch_w_to_mat(params["w1"])
    w2 = _torch_w_to_mat(params["w2"])
    # Conv biases b1/b2 are NOT added in the kernels: they are cancelled exactly by
    # the training-mode BatchNorm that follows each conv.

    # Phase 1: conv1 + BN1 partial stats.
    y1, st1 = _conv1_call(x, w1, W)
    sc1, sh1 = _bn_fold(st1, params["g1"], params["be1"], n)

    # Phase 2: BN1+ReLU fused with conv2, + BN2 partial stats.
    y2, st2 = _conv2_call(y1, sc1, sh1, w2, W)
    sc2, sh2 = _bn_fold(st2, params["g2"], params["be2"], n)

    # Phase 3: BN2 + ReLU (already NCHW layout).
    out = _bnrelu_call(y2, sc2, sh2)                   # (B, Cout, H*W) f32
    return out.reshape(B, Cout, H, W)


# ---------------- pure-JAX reference (f32, HIGHEST precision, with biases) ----------------
def _ref_block(x_nhwc, w_oihw, b, gamma, beta):
    w_hwio = jnp.transpose(w_oihw, (2, 3, 1, 0))  # (3,3,Cin,Cout)
    y = jax.lax.conv_general_dilated(
        x_nhwc, w_hwio, window_strides=(1, 1), padding="SAME",
        dimension_numbers=("NHWC", "HWIO", "NHWC"),
        precision=jax.lax.Precision.HIGHEST,
    ) + b.reshape(1, 1, 1, -1)
    mean = jnp.mean(y, axis=(0, 1, 2), keepdims=True)
    var = jnp.mean((y - mean) ** 2, axis=(0, 1, 2), keepdims=True)
    yn = (y - mean) * jax.lax.rsqrt(var + EPS)
    yn = yn * gamma.reshape(1, 1, 1, -1) + beta.reshape(1, 1, 1, -1)
    return jnp.maximum(yn, 0.0)


def double_conv_ref(x_nchw, params):
    x = jnp.transpose(x_nchw, (0, 2, 3, 1))
    h = _ref_block(x, params["w1"], params["b1"], params["g1"], params["be1"])
    y = _ref_block(h, params["w2"], params["b2"], params["g2"], params["be2"])
    return jnp.transpose(y, (0, 3, 1, 2))


if __name__ == "__main__":
    B, Cin, Cout, H, W = 2, 4, 8, 16, 16
    key = jax.random.PRNGKey(0)
    ks = jax.random.split(key, 9)

    # Deterministic synthetic parameters (shapes match nn.Conv2d / nn.BatchNorm2d).
    params = {
        "w1": 0.1 * jax.random.normal(ks[0], (Cout, Cin, 3, 3), jnp.float32),
        "b1": 0.1 * jax.random.normal(ks[1], (Cout,), jnp.float32),
        "g1": 1.0 + 0.1 * jax.random.normal(ks[2], (Cout,), jnp.float32),
        "be1": 0.1 * jax.random.normal(ks[3], (Cout,), jnp.float32),
        "w2": 0.1 * jax.random.normal(ks[4], (Cout, Cout, 3, 3), jnp.float32),
        "b2": 0.1 * jax.random.normal(ks[5], (Cout,), jnp.float32),
        "g2": 1.0 + 0.1 * jax.random.normal(ks[6], (Cout,), jnp.float32),
        "be2": 0.1 * jax.random.normal(ks[7], (Cout,), jnp.float32),
    }
    x = jax.random.normal(ks[8], (B, Cin, H, W), jnp.float32)  # NCHW, like PyTorch

    out = jax.block_until_ready(jax.jit(double_conv)(x, params))
    ref = jax.block_until_ready(double_conv_ref(x, params))

    assert out.shape == (B, Cout, H, W), out.shape
    # Tolerance accounts for bf16 MXU passes and bf16 inter-stage activations vs the
    # HIGHEST-precision f32 reference; real bugs produce O(1) errors.
    assert jnp.allclose(out, ref, atol=5e-2, rtol=5e-2), float(jnp.max(jnp.abs(out - ref)))

    print("KERNEL_OK")
</pallas_src>

<mosaic_0001>
module attributes {stable_mosaic.version = 11 : i64} {
  func.func @_conv_stats_kernel(%arg0: i32, %arg1: memref<1x4x256xf32, #tpu.memory_space<vmem>>, %arg2: memref<8x36xf32, #tpu.memory_space<vmem>>, %arg3: memref<1x8x256xbf16, #tpu.memory_space<vmem>>, %arg4: memref<1x8x2xf32, #tpu.memory_space<vmem>>, %arg5: memref<36x256xbf16, #tpu.memory_space<vmem>>) attributes {dimension_semantics = [#tpu.dimension_semantics<parallel>], iteration_bounds = array<i64: 2>, scalar_prefetch = 0 : i64, scratch_operands = 1 : i64, tpu.core_type = #tpu.core_type<tc>, window_params = [{transform_indices = @transform_0, window_bounds = array<i64: 1, 4, 256>}, {pipeline_mode = #tpu.pipeline_mode<synchronous>, transform_indices = @transform_1, window_bounds = array<i64: 8, 36>}, {transform_indices = @transform_2, window_bounds = array<i64: 1, 8, 256>}, {transform_indices = @transform_3, window_bounds = array<i64: 1, 8, 2>}]} {
    %c0 = arith.constant 0 : index
    %c0_0 = arith.constant 0 : index
    %c0_1 = arith.constant 0 : index
    %0 = vector.load %arg1[%c0, %c0_0, %c0_1] : memref<1x4x256xf32, #tpu.memory_space<vmem>>, vector<1x4x256xf32>
    %1 = vector.shape_cast %0 : vector<1x4x256xf32> to vector<4x256xf32>
    %2 = tpu.iota {dimensions = array<i32: 1>} : vector<4x256xi32>
    %c16_i32 = arith.constant 16 : i32
    %c0_i32 = arith.constant 0 : i32
    %3 = arith.cmpi eq, %c16_i32, %c0_i32 : i32
    %c1_i32 = arith.constant 1 : i32
    %4 = arith.select %3, %c1_i32, %c16_i32 : i32
    %5 = vector.broadcast %4 : i32 to vector<4x256xi32>
    %6 = arith.remsi %2, %5 : vector<4x256xi32>
    %c0_i32_2 = arith.constant 0 : i32
    %7 = vector.broadcast %c0_i32_2 : i32 to vector<4x256xi32>
    %8 = arith.cmpi ne, %6, %7 : vector<4x256xi32>
    %c0_i32_3 = arith.constant 0 : i32
    %9 = vector.broadcast %c0_i32_3 : i32 to vector<4x256xi32>
    %10 = arith.cmpi slt, %6, %9 : vector<4x256xi32>
    %c0_i32_4 = arith.constant 0 : i32
    %11 = arith.cmpi slt, %4, %c0_i32_4 : i32
    %12 = vector.broadcast %11 : i1 to vector<4x256xi1>
    %13 = vector.broadcast %12 : vector<4x256xi1> to vector<4x256xi1>
    %14 = arith.xori %10, %13 : vector<4x256xi1>
    %15 = arith.andi %14, %8 : vector<4x256xi1>
    %16 = vector.broadcast %4 : i32 to vector<4x256xi32>
    %17 = arith.addi %6, %16 : vector<4x256xi32>
    %18 = arith.select %15, %17, %6 : vector<4x256xi1>, vector<4x256xi32>
    %c17_i32 = arith.constant 17 : i32
    %19 = tpu.dynamic_rotate %1 by %c17_i32 dim 1 : vector<4x256xf32>, i32 -> vector<4x256xf32>
    %c1_i32_5 = arith.constant 1 : i32
    %20 = vector.broadcast %c1_i32_5 : i32 to vector<4x256xi32>
    %21 = arith.cmpi sge, %18, %20 : vector<4x256xi32>
    %c16_i32_6 = arith.constant 16 : i32
    %22 = vector.broadcast %c16_i32_6 : i32 to vector<4x256xi32>
    %23 = arith.cmpi sge, %2, %22 : vector<4x256xi32>
    %24 = arith.andi %21, %23 : vector<4x256xi1>
    %cst = arith.constant 0.000000e+00 : f32
    %25 = vector.broadcast %cst : f32 to vector<4x256xf32>
    %26 = arith.select %24, %19, %25 : vector<4x256xi1>, vector<4x256xf32>
    %27 = arith.truncf %26 : vector<4x256xf32> to vector<4x256xbf16>
    %c0_7 = arith.constant 0 : index
    %c0_8 = arith.constant 0 : index
    %28 = vector.load %arg5[%c0_7, %c0_8] : memref<36x256xbf16, #tpu.memory_space<vmem>>, vector<4x256xbf16>
    tpu.vector_store %arg5[%c0_7, %c0_8], %27 {strides = array<i32>} : memref<36x256xbf16, #tpu.memory_space<vmem>>, vector<4x256xbf16>,
    %c16_i32_9 = arith.constant 16 : i32
    %29 = tpu.dynamic_rotate %1 by %c16_i32_9 dim 1 : vector<4x256xf32>, i32 -> vector<4x256xf32>
    %c16_i32_10 = arith.constant 16 : i32
    %30 = vector.broadcast %c16_i32_10 : i32 to vector<4x256xi32>
    %31 = arith.cmpi sge, %2, %30 : vector<4x256xi32>
    %cst_11 = arith.constant 0.000000e+00 : f32
    %32 = vector.broadcast %cst_11 : f32 to vector<4x256xf32>
    %33 = arith.select %31, %29, %32 : vector<4x256xi1>, vector<4x256xf32>
    %34 = arith.truncf %33 : vector<4x256xf32> to vector<4x256xbf16>
    %c4 = arith.constant 4 : index
    %c0_12 = arith.constant 0 : index
    %35 = vector.load %arg5[%c4, %c0_12] : memref<36x256xbf16, #tpu.memory_space<vmem>>, vector<4x256xbf16>
    tpu.vector_store %arg5[%c4, %c0_12], %34 {strides = array<i32>} : memref<36x256xbf16, #tpu.memory_space<vmem>>, vector<4x256xbf16>,
    %c15_i32 = arith.constant 15 : i32
    %36 = tpu.dynamic_rotate %1 by %c15_i32 dim 1 : vector<4x256xf32>, i32 -> vector<4x256xf32>
    %c14_i32 = arith.constant 14 : i32
    %37 = vector.broadcast %c14_i32 : i32 to vector<4x256xi32>
    %38 = arith.cmpi sle, %18, %37 : vector<4x256xi32>
    %c16_i32_13 = arith.constant 16 : i32
    %39 = vector.broadcast %c16_i32_13 : i32 to vector<4x256xi32>
    %40 = arith.cmpi sge, %2, %39 : vector<4x256xi32>
    %41 = arith.andi %38, %40 : vector<4x256xi1>
    %cst_14 = arith.constant 0.000000e+00 : f32
    %42 = vector.broadcast %cst_14 : f32 to vector<4x256xf32>
    %43 = arith.select %41, %36, %42 : vector<4x256xi1>, vector<4x256xf32>
    %44 = arith.truncf %43 : vector<4x256xf32> to vector<4x256xbf16>
    %c8 = arith.constant 8 : index
    %c0_15 = arith.constant 0 : index
    %45 = vector.load %arg5[%c8, %c0_15] : memref<36x256xbf16, #tpu.memory_space<vmem>>, vector<4x256xbf16>
    tpu.vector_store %arg5[%c8, %c0_15], %44 {strides = array<i32>} : memref<36x256xbf16, #tpu.memory_space<vmem>>, vector<4x256xbf16>,
    %c1_i32_16 = arith.constant 1 : i32
    %46 = tpu.dynamic_rotate %1 by %c1_i32_16 dim 1 : vector<4x256xf32>, i32 -> vector<4x256xf32>
    %c1_i32_17 = arith.constant 1 : i32
    %47 = vector.broadcast %c1_i32_17 : i32 to vector<4x256xi32>
    %48 = arith.cmpi sge, %18, %47 : vector<4x256xi32>
    %cst_18 = arith.constant 0.000000e+00 : f32
    %49 = vector.broadcast %cst_18 : f32 to vector<4x256xf32>
    %50 = arith.select %48, %46, %49 : vector<4x256xi1>, vector<4x256xf32>
    %51 = arith.truncf %50 : vector<4x256xf32> to vector<4x256xbf16>
    %c12 = arith.constant 12 : index
    %c0_19 = arith.constant 0 : index
    %52 = vector.load %arg5[%c12, %c0_19] : memref<36x256xbf16, #tpu.memory_space<vmem>>, vector<4x256xbf16>
    tpu.vector_store %arg5[%c12, %c0_19], %51 {strides = array<i32>} : memref<36x256xbf16, #tpu.memory_space<vmem>>, vector<4x256xbf16>,
    %53 = arith.truncf %1 : vector<4x256xf32> to vector<4x256xbf16>
    %c16 = arith.constant 16 : index
    %c0_20 = arith.constant 0 : index
    %54 = vector.load %arg5[%c16, %c0_20] : memref<36x256xbf16, #tpu.memory_space<vmem>>, vector<4x256xbf16>
    tpu.vector_store %arg5[%c16, %c0_20], %53 {strides = array<i32>} : memref<36x256xbf16, #tpu.memory_space<vmem>>, vector<4x256xbf16>,
    %c255_i32 = arith.constant 255 : i32
    %55 = tpu.dynamic_rotate %1 by %c255_i32 dim 1 : vector<4x256xf32>, i32 -> vector<4x256xf32>
    %c14_i32_21 = arith.constant 14 : i32
    %56 = vector.broadcast %c14_i32_21 : i32 to vector<4x256xi32>
    %57 = arith.cmpi sle, %18, %56 : vector<4x256xi32>
    %cst_22 = arith.constant 0.000000e+00 : f32
    %58 = vector.broadcast %cst_22 : f32 to vector<4x256xf32>
    %59 = arith.select %57, %55, %58 : vector<4x256xi1>, vector<4x256xf32>
    %60 = arith.truncf %59 : vector<4x256xf32> to vector<4x256xbf16>
    %c20 = arith.constant 20 : index
    %c0_23 = arith.constant 0 : index
    %61 = vector.load %arg5[%c20, %c0_23] : memref<36x256xbf16, #tpu.memory_space<vmem>>, vector<4x256xbf16>
    tpu.vector_store %arg5[%c20, %c0_23], %60 {strides = array<i32>} : memref<36x256xbf16, #tpu.memory_space<vmem>>, vector<4x256xbf16>,
    %c241_i32 = arith.constant 241 : i32
    %62 = tpu.dynamic_rotate %1 by %c241_i32 dim 1 : vector<4x256xf32>, i32 -> vector<4x256xf32>
    %c1_i32_24 = arith.constant 1 : i32
    %63 = vector.broadcast %c1_i32_24 : i32 to vector<4x256xi32>
    %64 = arith.cmpi sge, %18, %63 : vector<4x256xi32>
    %c240_i32 = arith.constant 240 : i32
    %65 = vector.broadcast %c240_i32 : i32 to vector<4x256xi32>
    %66 = arith.cmpi slt, %2, %65 : vector<4x256xi32>
    %67 = arith.andi %64, %66 : vector<4x256xi1>
    %cst_25 = arith.constant 0.000000e+00 : f32
    %68 = vector.broadcast %cst_25 : f32 to vector<4x256xf32>
    %69 = arith.select %67, %62, %68 : vector<4x256xi1>, vector<4x256xf32>
    %70 = arith.truncf %69 : vector<4x256xf32> to vector<4x256xbf16>
    %c24 = arith.constant 24 : index
    %c0_26 = arith.constant 0 : index
    %71 = vector.load %arg5[%c24, %c0_26] : memref<36x256xbf16, #tpu.memory_space<vmem>>, vector<4x256xbf16>
    tpu.vector_store %arg5[%c24, %c0_26], %70 {strides = array<i32>} : memref<36x256xbf16, #tpu.memory_space<vmem>>, vector<4x256xbf16>,
    %c240_i32_27 = arith.constant 240 : i32
    %72 = tpu.dynamic_rotate %1 by %c240_i32_27 dim 1 : vector<4x256xf32>, i32 -> vector<4x256xf32>
    %c240_i32_28 = arith.constant 240 : i32
    %73 = vector.broadcast %c240_i32_28 : i32 to vector<4x256xi32>
    %74 = arith.cmpi slt, %2, %73 : vector<4x256xi32>
    %cst_29 = arith.constant 0.000000e+00 : f32
    %75 = vector.broadcast %cst_29 : f32 to vector<4x256xf32>
    %76 = arith.select %74, %72, %75 : vector<4x256xi1>, vector<4x256xf32>
    %77 = arith.truncf %76 : vector<4x256xf32> to vector<4x256xbf16>
    %c28 = arith.constant 28 : index
    %c0_30 = arith.constant 0 : index
    %78 = vector.load %arg5[%c28, %c0_30] : memref<36x256xbf16, #tpu.memory_space<vmem>>, vector<4x256xbf16>
    tpu.vector_store %arg5[%c28, %c0_30], %77 {strides = array<i32>} : memref<36x256xbf16, #tpu.memory_space<vmem>>, vector<4x256xbf16>,
    %c239_i32 = arith.constant 239 : i32
    %79 = tpu.dynamic_rotate %1 by %c239_i32 dim 1 : vector<4x256xf32>, i32 -> vector<4x256xf32>
    %c14_i32_31 = arith.constant 14 : i32
    %80 = vector.broadcast %c14_i32_31 : i32 to vector<4x256xi32>
    %81 = arith.cmpi sle, %18, %80 : vector<4x256xi32>
    %c240_i32_32 = arith.constant 240 : i32
    %82 = vector.broadcast %c240_i32_32 : i32 to vector<4x256xi32>
    %83 = arith.cmpi slt, %2, %82 : vector<4x256xi32>
    %84 = arith.andi %81, %83 : vector<4x256xi1>
    %cst_33 = arith.constant 0.000000e+00 : f32
    %85 = vector.broadcast %cst_33 : f32 to vector<4x256xf32>
    %86 = arith.select %84, %79, %85 : vector<4x256xi1>, vector<4x256xf32>
    %87 = arith.truncf %86 : vector<4x256xf32> to vector<4x256xbf16>
    %c32 = arith.constant 32 : index
    %c0_34 = arith.constant 0 : index
    %88 = vector.load %arg5[%c32, %c0_34] : memref<36x256xbf16, #tpu.memory_space<vmem>>, vector<4x256xbf16>
    tpu.vector_store %arg5[%c32, %c0_34], %87 {strides = array<i32>} : memref<36x256xbf16, #tpu.memory_space<vmem>>, vector<4x256xbf16>,
    %c0_35 = arith.constant 0 : index
    %c0_36 = arith.constant 0 : index
    %89 = vector.load %arg2[%c0_35, %c0_36] : memref<8x36xf32, #tpu.memory_space<vmem>>, vector<8x36xf32>
    %90 = arith.truncf %89 : vector<8x36xf32> to vector<8x36xbf16>
    %c0_37 = arith.constant 0 : index
    %c0_38 = arith.constant 0 : index
    %91 = vector.load %arg5[%c0_37, %c0_38] : memref<36x256xbf16, #tpu.memory_space<vmem>>, vector<36x256xbf16>
    %cst_39 = arith.constant dense<0.000000e+00> : vector<8x256xf32>
    %92 = tpu.matmul %90, %91, %cst_39 {dimension_numbers = #tpu.dot_dimension_numbers<[1], [0], [0], [1], [0, 0, 1, 1], [], []>} : vector<8x36xbf16>, vector<36x256xbf16>, vector<8x256xf32> -> vector<8x256xf32>
    %cst_40 = arith.constant dense<0.000000e+00> : vector<8xf32>
    %93 = vector.multi_reduction <add>, %92, %cst_40 [1] : vector<8x256xf32> to vector<8xf32>
    %94 = vector.shape_cast %93 : vector<8xf32> to vector<8x1xf32>
    %95 = arith.mulf %92, %92 : vector<8x256xf32>
    %cst_41 = arith.constant dense<0.000000e+00> : vector<8xf32>
    %96 = vector.multi_reduction <add>, %95, %cst_41 [1] : vector<8x256xf32> to vector<8xf32>
    %97 = vector.shape_cast %96 : vector<8xf32> to vector<8x1xf32>
    %98 = tpu.concatenate %94, %97 in 1 : vector<8x1xf32>, vector<8x1xf32> -> vector<8x2xf32>
    %c0_42 = arith.constant 0 : index
    %c0_43 = arith.constant 0 : index
    %c0_44 = arith.constant 0 : index
    %99 = vector.load %arg4[%c0_42, %c0_43, %c0_44] : memref<1x8x2xf32, #tpu.memory_space<vmem>>, vector<1x8x2xf32>
    %100 = vector.shape_cast %99 : vector<1x8x2xf32> to vector<8x2xf32>
    %101 = vector.shape_cast %98 : vector<8x2xf32> to vector<1x8x2xf32>
    tpu.vector_store %arg4[%c0_42, %c0_43, %c0_44], %101 {strides = array<i32>} : memref<1x8x2xf32, #tpu.memory_space<vmem>>, vector<1x8x2xf32>,
    %102 = arith.truncf %92 : vector<8x256xf32> to vector<8x256xbf16>
    %c0_45 = arith.constant 0 : index
    %c0_46 = arith.constant 0 : index
    %c0_47 = arith.constant 0 : index
    %103 = vector.load %arg3[%c0_45, %c0_46, %c0_47] : memref<1x8x256xbf16, #tpu.memory_space<vmem>>, vector<1x8x256xbf16>
    %104 = vector.shape_cast %103 : vector<1x8x256xbf16> to vector<8x256xbf16>
    %105 = vector.shape_cast %102 : vector<8x256xbf16> to vector<1x8x256xbf16>
    tpu.vector_store %arg3[%c0_45, %c0_46, %c0_47], %105 {strides = array<i32>} : memref<1x8x256xbf16, #tpu.memory_space<vmem>>, vector<1x8x256xbf16>,
    return
  }
  func.func @transform_0(%arg0: i32) -> (i32, i32, i32) {
    %c0_i32 = arith.constant 0 : i32
    %c0_i32_0 = arith.constant 0 : i32
    %c0_i32_1 = arith.constant 0 : i32
    return %arg0, %c0_i32, %c0_i32_0 : i32, i32, i32
  }
  func.func @transform_1(%arg0: i32) -> (i32, i32) {
    %c0_i32 = arith.constant 0 : i32
    %c0_i32_0 = arith.constant 0 : i32
    %c0_i32_1 = arith.constant 0 : i32
    return %c0_i32, %c0_i32_0 : i32, i32
  }
  func.func @transform_2(%arg0: i32) -> (i32, i32, i32) {
    %c0_i32 = arith.constant 0 : i32
    %c0_i32_0 = arith.constant 0 : i32
    %c0_i32_1 = arith.constant 0 : i32
    return %arg0, %c0_i32, %c0_i32_0 : i32, i32, i32
  }
  func.func @transform_3(%arg0: i32) -> (i32, i32, i32) {
    %c0_i32 = arith.constant 0 : i32
    %c0_i32_0 = arith.constant 0 : i32
    %c0_i32_1 = arith.constant 0 : i32
    return %arg0, %c0_i32, %c0_i32_0 : i32, i32, i32
  }
}

module attributes {stable_mosaic.version = 11 : i64} {
  func.func @_bnrelu_conv_stats_kernel(%arg0: i32, %arg1: memref<1x8x256xbf16, #tpu.memory_space<vmem>>, %arg2: memref<8x1xf32, #tpu.memory_space<vmem>>, %arg3: memref<8x1xf32, #tpu.memory_space<vmem>>, %arg4: memref<8x72xf32, #tpu.memory_space<vmem>>, %arg5: memref<1x8x256xbf16, #tpu.memory_space<vmem>>, %arg6: memref<1x8x2xf32, #tpu.memory_space<vmem>>, %arg7: memref<72x256xbf16, #tpu.memory_space<vmem>>) attributes {dimension_semantics = [#tpu.dimension_semantics<parallel>], iteration_bounds = array<i64: 2>, scalar_prefetch = 0 : i64, scratch_operands = 1 : i64, tpu.core_type = #tpu.core_type<tc>, window_params = [{transform_indices = @transform_0, window_bounds = array<i64: 1, 8, 256>}, {pipeline_mode = #tpu.pipeline_mode<synchronous>, transform_indices = @transform_1, window_bounds = array<i64: 8, 1>}, {pipeline_mode = #tpu.pipeline_mode<synchronous>, transform_indices = @transform_2, window_bounds = array<i64: 8, 1>}, {pipeline_mode = #tpu.pipeline_mode<synchronous>, transform_indices = @transform_3, window_bounds = array<i64: 8, 72>}, {transform_indices = @transform_4, window_bounds = array<i64: 1, 8, 256>}, {transform_indices = @transform_5, window_bounds = array<i64: 1, 8, 2>}]} {
    %c0 = arith.constant 0 : index
    %c0_0 = arith.constant 0 : index
    %c0_1 = arith.constant 0 : index
    %0 = vector.load %arg1[%c0, %c0_0, %c0_1] : memref<1x8x256xbf16, #tpu.memory_space<vmem>>, vector<1x8x256xbf16>
    %1 = vector.shape_cast %0 : vector<1x8x256xbf16> to vector<8x256xbf16>
    %2 = arith.extf %1 : vector<8x256xbf16> to vector<8x256xf32>
    %c0_2 = arith.constant 0 : index
    %c0_3 = arith.constant 0 : index
    %3 = vector.load %arg2[%c0_2, %c0_3] : memref<8x1xf32, #tpu.memory_space<vmem>>, vector<8x1xf32>
    %4 = vector.broadcast %3 : vector<8x1xf32> to vector<8x256xf32>
    %5 = arith.mulf %2, %4 : vector<8x256xf32>
    %c0_4 = arith.constant 0 : index
    %c0_5 = arith.constant 0 : index
    %6 = vector.load %arg3[%c0_4, %c0_5] : memref<8x1xf32, #tpu.memory_space<vmem>>, vector<8x1xf32>
    %7 = vector.broadcast %6 : vector<8x1xf32> to vector<8x256xf32>
    %8 = arith.addf %5, %7 : vector<8x256xf32>
    %cst = arith.constant 0.000000e+00 : f32
    %9 = vector.broadcast %cst : f32 to vector<8x256xf32>
    %10 = arith.maximumf %8, %9 : vector<8x256xf32>
    %11 = tpu.iota {dimensions = array<i32: 1>} : vector<8x256xi32>
    %c16_i32 = arith.constant 16 : i32
    %c0_i32 = arith.constant 0 : i32
    %12 = arith.cmpi eq, %c16_i32, %c0_i32 : i32
    %c1_i32 = arith.constant 1 : i32
    %13 = arith.select %12, %c1_i32, %c16_i32 : i32
    %14 = vector.broadcast %13 : i32 to vector<8x256xi32>
    %15 = arith.remsi %11, %14 : vector<8x256xi32>
    %c0_i32_6 = arith.constant 0 : i32
    %16 = vector.broadcast %c0_i32_6 : i32 to vector<8x256xi32>
    %17 = arith.cmpi ne, %15, %16 : vector<8x256xi32>
    %c0_i32_7 = arith.constant 0 : i32
    %18 = vector.broadcast %c0_i32_7 : i32 to vector<8x256xi32>
    %19 = arith.cmpi slt, %15, %18 : vector<8x256xi32>
    %c0_i32_8 = arith.constant 0 : i32
    %20 = arith.cmpi slt, %13, %c0_i32_8 : i32
    %21 = vector.broadcast %20 : i1 to vector<8x256xi1>
    %22 = vector.broadcast %21 : vector<8x256xi1> to vector<8x256xi1>
    %23 = arith.xori %19, %22 : vector<8x256xi1>
    %24 = arith.andi %23, %17 : vector<8x256xi1>
    %25 = vector.broadcast %13 : i32 to vector<8x256xi32>
    %26 = arith.addi %15, %25 : vector<8x256xi32>
    %27 = arith.select %24, %26, %15 : vector<8x256xi1>, vector<8x256xi32>
    %c17_i32 = arith.constant 17 : i32
    %28 = tpu.dynamic_rotate %10 by %c17_i32 dim 1 : vector<8x256xf32>, i32 -> vector<8x256xf32>
    %c1_i32_9 = arith.constant 1 : i32
    %29 = vector.broadcast %c1_i32_9 : i32 to vector<8x256xi32>
    %30 = arith.cmpi sge, %27, %29 : vector<8x256xi32>
    %c16_i32_10 = arith.constant 16 : i32
    %31 = vector.broadcast %c16_i32_10 : i32 to vector<8x256xi32>
    %32 = arith.cmpi sge, %11, %31 : vector<8x256xi32>
    %33 = arith.andi %30, %32 : vector<8x256xi1>
    %cst_11 = arith.constant 0.000000e+00 : f32
    %34 = vector.broadcast %cst_11 : f32 to vector<8x256xf32>
    %35 = arith.select %33, %28, %34 : vector<8x256xi1>, vector<8x256xf32>
    %36 = arith.truncf %35 : vector<8x256xf32> to vector<8x256xbf16>
    %c0_12 = arith.constant 0 : index
    %c0_13 = arith.constant 0 : index
    %37 = vector.load %arg7[%c0_12, %c0_13] : memref<72x256xbf16, #tpu.memory_space<vmem>>, vector<8x256xbf16>
    tpu.vector_store %arg7[%c0_12, %c0_13], %36 {strides = array<i32>} : memref<72x256xbf16, #tpu.memory_space<vmem>>, vector<8x256xbf16>,
    %c16_i32_14 = arith.constant 16 : i32
    %38 = tpu.dynamic_rotate %10 by %c16_i32_14 dim 1 : vector<8x256xf32>, i32 -> vector<8x256xf32>
    %c16_i32_15 = arith.constant 16 : i32
    %39 = vector.broadcast %c16_i32_15 : i32 to vector<8x256xi32>
    %40 = arith.cmpi sge, %11, %39 : vector<8x256xi32>
    %cst_16 = arith.constant 0.000000e+00 : f32
    %41 = vector.broadcast %cst_16 : f32 to vector<8x256xf32>
    %42 = arith.select %40, %38, %41 : vector<8x256xi1>, vector<8x256xf32>
    %43 = arith.truncf %42 : vector<8x256xf32> to vector<8x256xbf16>
    %c8 = arith.constant 8 : index
    %c0_17 = arith.constant 0 : index
    %44 = vector.load %arg7[%c8, %c0_17] : memref<72x256xbf16, #tpu.memory_space<vmem>>, vector<8x256xbf16>
    tpu.vector_store %arg7[%c8, %c0_17], %43 {strides = array<i32>} : memref<72x256xbf16, #tpu.memory_space<vmem>>, vector<8x256xbf16>,
    %c15_i32 = arith.constant 15 : i32
    %45 = tpu.dynamic_rotate %10 by %c15_i32 dim 1 : vector<8x256xf32>, i32 -> vector<8x256xf32>
    %c14_i32 = arith.constant 14 : i32
    %46 = vector.broadcast %c14_i32 : i32 to vector<8x256xi32>
    %47 = arith.cmpi sle, %27, %46 : vector<8x256xi32>
    %c16_i32_18 = arith.constant 16 : i32
    %48 = vector.broadcast %c16_i32_18 : i32 to vector<8x256xi32>
    %49 = arith.cmpi sge, %11, %48 : vector<8x256xi32>
    %50 = arith.andi %47, %49 : vector<8x256xi1>
    %cst_19 = arith.constant 0.000000e+00 : f32
    %51 = vector.broadcast %cst_19 : f32 to vector<8x256xf32>
    %52 = arith.select %50, %45, %51 : vector<8x256xi1>, vector<8x256xf32>
    %53 = arith.truncf %52 : vector<8x256xf32> to vector<8x256xbf16>
    %c16 = arith.constant 16 : index
    %c0_20 = arith.constant 0 : index
    %54 = vector.load %arg7[%c16, %c0_20] : memref<72x256xbf16, #tpu.memory_space<vmem>>, vector<8x256xbf16>
    tpu.vector_store %arg7[%c16, %c0_20], %53 {strides = array<i32>} : memref<72x256xbf16, #tpu.memory_space<vmem>>, vector<8x256xbf16>,
    %c1_i32_21 = arith.constant 1 : i32
    %55 = tpu.dynamic_rotate %10 by %c1_i32_21 dim 1 : vector<8x256xf32>, i32 -> vector<8x256xf32>
    %c1_i32_22 = arith.constant 1 : i32
    %56 = vector.broadcast %c1_i32_22 : i32 to vector<8x256xi32>
    %57 = arith.cmpi sge, %27, %56 : vector<8x256xi32>
    %cst_23 = arith.constant 0.000000e+00 : f32
    %58 = vector.broadcast %cst_23 : f32 to vector<8x256xf32>
    %59 = arith.select %57, %55, %58 : vector<8x256xi1>, vector<8x256xf32>
    %60 = arith.truncf %59 : vector<8x256xf32> to vector<8x256xbf16>
    %c24 = arith.constant 24 : index
    %c0_24 = arith.constant 0 : index
    %61 = vector.load %arg7[%c24, %c0_24] : memref<72x256xbf16, #tpu.memory_space<vmem>>, vector<8x256xbf16>
    tpu.vector_store %arg7[%c24, %c0_24], %60 {strides = array<i32>} : memref<72x256xbf16, #tpu.memory_space<vmem>>, vector<8x256xbf16>,
    %62 = arith.truncf %10 : vector<8x256xf32> to vector<8x256xbf16>
    %c32 = arith.constant 32 : index
    %c0_25 = arith.constant 0 : index
    %63 = vector.load %arg7[%c32, %c0_25] : memref<72x256xbf16, #tpu.memory_space<vmem>>, vector<8x256xbf16>
    tpu.vector_store %arg7[%c32, %c0_25], %62 {strides = array<i32>} : memref<72x256xbf16, #tpu.memory_space<vmem>>, vector<8x256xbf16>,
    %c255_i32 = arith.constant 255 : i32
    %64 = tpu.dynamic_rotate %10 by %c255_i32 dim 1 : vector<8x256xf32>, i32 -> vector<8x256xf32>
    %c14_i32_26 = arith.constant 14 : i32
    %65 = vector.broadcast %c14_i32_26 : i32 to vector<8x256xi32>
    %66 = arith.cmpi sle, %27, %65 : vector<8x256xi32>
    %cst_27 = arith.constant 0.000000e+00 : f32
    %67 = vector.broadcast %cst_27 : f32 to vector<8x256xf32>
    %68 = arith.select %66, %64, %67 : vector<8x256xi1>, vector<8x256xf32>
    %69 = arith.truncf %68 : vector<8x256xf32> to vector<8x256xbf16>
    %c40 = arith.constant 40 : index
    %c0_28 = arith.constant 0 : index
    %70 = vector.load %arg7[%c40, %c0_28] : memref<72x256xbf16, #tpu.memory_space<vmem>>, vector<8x256xbf16>
    tpu.vector_store %arg7[%c40, %c0_28], %69 {strides = array<i32>} : memref<72x256xbf16, #tpu.memory_space<vmem>>, vector<8x256xbf16>,
    %c241_i32 = arith.constant 241 : i32
    %71 = tpu.dynamic_rotate %10 by %c241_i32 dim 1 : vector<8x256xf32>, i32 -> vector<8x256xf32>
    %c1_i32_29 = arith.constant 1 : i32
    %72 = vector.broadcast %c1_i32_29 : i32 to vector<8x256xi32>
    %73 = arith.cmpi sge, %27, %72 : vector<8x256xi32>
    %c240_i32 = arith.constant 240 : i32
    %74 = vector.broadcast %c240_i32 : i32 to vector<8x256xi32>
    %75 = arith.cmpi slt, %11, %74 : vector<8x256xi32>
    %76 = arith.andi %73, %75 : vector<8x256xi1>
    %cst_30 = arith.constant 0.000000e+00 : f32
    %77 = vector.broadcast %cst_30 : f32 to vector<8x256xf32>
    %78 = arith.select %76, %71, %77 : vector<8x256xi1>, vector<8x256xf32>
    %79 = arith.truncf %78 : vector<8x256xf32> to vector<8x256xbf16>
    %c48 = arith.constant 48 : index
    %c0_31 = arith.constant 0 : index
    %80 = vector.load %arg7[%c48, %c0_31] : memref<72x256xbf16, #tpu.memory_space<vmem>>, vector<8x256xbf16>
    tpu.vector_store %arg7[%c48, %c0_31], %79 {strides = array<i32>} : memref<72x256xbf16, #tpu.memory_space<vmem>>, vector<8x256xbf16>,
    %c240_i32_32 = arith.constant 240 : i32
    %81 = tpu.dynamic_rotate %10 by %c240_i32_32 dim 1 : vector<8x256xf32>, i32 -> vector<8x256xf32>
    %c240_i32_33 = arith.constant 240 : i32
    %82 = vector.broadcast %c240_i32_33 : i32 to vector<8x256xi32>
    %83 = arith.cmpi slt, %11, %82 : vector<8x256xi32>
    %cst_34 = arith.constant 0.000000e+00 : f32
    %84 = vector.broadcast %cst_34 : f32 to vector<8x256xf32>
    %85 = arith.select %83, %81, %84 : vector<8x256xi1>, vector<8x256xf32>
    %86 = arith.truncf %85 : vector<8x256xf32> to vector<8x256xbf16>
    %c56 = arith.constant 56 : index
    %c0_35 = arith.constant 0 : index
    %87 = vector.load %arg7[%c56, %c0_35] : memref<72x256xbf16, #tpu.memory_space<vmem>>, vector<8x256xbf16>
    tpu.vector_store %arg7[%c56, %c0_35], %86 {strides = array<i32>} : memref<72x256xbf16, #tpu.memory_space<vmem>>, vector<8x256xbf16>,
    %c239_i32 = arith.constant 239 : i32
    %88 = tpu.dynamic_rotate %10 by %c239_i32 dim 1 : vector<8x256xf32>, i32 -> vector<8x256xf32>
    %c14_i32_36 = arith.constant 14 : i32
    %89 = vector.broadcast %c14_i32_36 : i32 to vector<8x256xi32>
    %90 = arith.cmpi sle, %27, %89 : vector<8x256xi32>
    %c240_i32_37 = arith.constant 240 : i32
    %91 = vector.broadcast %c240_i32_37 : i32 to vector<8x256xi32>
    %92 = arith.cmpi slt, %11, %91 : vector<8x256xi32>
    %93 = arith.andi %90, %92 : vector<8x256xi1>
    %cst_38 = arith.constant 0.000000e+00 : f32
    %94 = vector.broadcast %cst_38 : f32 to vector<8x256xf32>
    %95 = arith.select %93, %88, %94 : vector<8x256xi1>, vector<8x256xf32>
    %96 = arith.truncf %95 : vector<8x256xf32> to vector<8x256xbf16>
    %c64 = arith.constant 64 : index
    %c0_39 = arith.constant 0 : index
    %97 = vector.load %arg7[%c64, %c0_39] : memref<72x256xbf16, #tpu.memory_space<vmem>>, vector<8x256xbf16>
    tpu.vector_store %arg7[%c64, %c0_39], %96 {strides = array<i32>} : memref<72x256xbf16, #tpu.memory_space<vmem>>, vector<8x256xbf16>,
    %c0_40 = arith.constant 0 : index
    %c0_41 = arith.constant 0 : index
    %98 = vector.load %arg4[%c0_40, %c0_41] : memref<8x72xf32, #tpu.memory_space<vmem>>, vector<8x72xf32>
    %99 = arith.truncf %98 : vector<8x72xf32> to vector<8x72xbf16>
    %c0_42 = arith.constant 0 : index
    %c0_43 = arith.constant 0 : index
    %100 = vector.load %arg7[%c0_42, %c0_43] : memref<72x256xbf16, #tpu.memory_space<vmem>>, vector<72x256xbf16>
    %cst_44 = arith.constant dense<0.000000e+00> : vector<8x256xf32>
    %101 = tpu.matmul %99, %100, %cst_44 {dimension_numbers = #tpu.dot_dimension_numbers<[1], [0], [0], [1], [0, 0, 1, 1], [], []>} : vector<8x72xbf16>, vector<72x256xbf16>, vector<8x256xf32> -> vector<8x256xf32>
    %cst_45 = arith.constant dense<0.000000e+00> : vector<8xf32>
    %102 = vector.multi_reduction <add>, %101, %cst_45 [1] : vector<8x256xf32> to vector<8xf32>
    %103 = vector.shape_cast %102 : vector<8xf32> to vector<8x1xf32>
    %104 = arith.mulf %101, %101 : vector<8x256xf32>
    %cst_46 = arith.constant dense<0.000000e+00> : vector<8xf32>
    %105 = vector.multi_reduction <add>, %104, %cst_46 [1] : vector<8x256xf32> to vector<8xf32>
    %106 = vector.shape_cast %105 : vector<8xf32> to vector<8x1xf32>
    %107 = tpu.concatenate %103, %106 in 1 : vector<8x1xf32>, vector<8x1xf32> -> vector<8x2xf32>
    %c0_47 = arith.constant 0 : index
    %c0_48 = arith.constant 0 : index
    %c0_49 = arith.constant 0 : index
    %108 = vector.load %arg6[%c0_47, %c0_48, %c0_49] : memref<1x8x2xf32, #tpu.memory_space<vmem>>, vector<1x8x2xf32>
    %109 = vector.shape_cast %108 : vector<1x8x2xf32> to vector<8x2xf32>
    %110 = vector.shape_cast %107 : vector<8x2xf32> to vector<1x8x2xf32>
    tpu.vector_store %arg6[%c0_47, %c0_48, %c0_49], %110 {strides = array<i32>} : memref<1x8x2xf32, #tpu.memory_space<vmem>>, vector<1x8x2xf32>,
    %111 = arith.truncf %101 : vector<8x256xf32> to vector<8x256xbf16>
    %c0_50 = arith.constant 0 : index
    %c0_51 = arith.constant 0 : index
    %c0_52 = arith.constant 0 : index
    %112 = vector.load %arg5[%c0_50, %c0_51, %c0_52] : memref<1x8x256xbf16, #tpu.memory_space<vmem>>, vector<1x8x256xbf16>
    %113 = vector.shape_cast %112 : vector<1x8x256xbf16> to vector<8x256xbf16>
    %114 = vector.shape_cast %111 : vector<8x256xbf16> to vector<1x8x256xbf16>
    tpu.vector_store %arg5[%c0_50, %c0_51, %c0_52], %114 {strides = array<i32>} : memref<1x8x256xbf16, #tpu.memory_space<vmem>>, vector<1x8x256xbf16>,
    return
  }
  func.func @transform_0(%arg0: i32) -> (i32, i32, i32) {
    %c0_i32 = arith.constant 0 : i32
    %c0_i32_0 = arith.constant 0 : i32
    %c0_i32_1 = arith.constant 0 : i32
    return %arg0, %c0_i32, %c0_i32_0 : i32, i32, i32
  }
  func.func @transform_1(%arg0: i32) -> (i32, i32) {
    %c0_i32 = arith.constant 0 : i32
    %c0_i32_0 = arith.constant 0 : i32
    %c0_i32_1 = arith.constant 0 : i32
    return %c0_i32, %c0_i32_0 : i32, i32
  }
  func.func @transform_2(%arg0: i32) -> (i32, i32) {
    %c0_i32 = arith.constant 0 : i32
    %c0_i32_0 = arith.constant 0 : i32
    %c0_i32_1 = arith.constant 0 : i32
    return %c0_i32, %c0_i32_0 : i32, i32
  }
  func.func @transform_3(%arg0: i32) -> (i32, i32) {
    %c0_i32 = arith.constant 0 : i32
    %c0_i32_0 = arith.constant 0 : i32
    %c0_i32_1 = arith.constant 0 : i32
    return %c0_i32, %c0_i32_0 : i32, i32
  }
  func.func @transform_4(%arg0: i32) -> (i32, i32, i32) {
    %c0_i32 = arith.constant 0 : i32
    %c0_i32_0 = arith.constant 0 : i32
    %c0_i32_1 = arith.constant 0 : i32
    return %arg0, %c0_i32, %c0_i32_0 : i32, i32, i32
  }
  func.func @transform_5(%arg0: i32) -> (i32, i32, i32) {
    %c0_i32 = arith.constant 0 : i32
    %c0_i32_0 = arith.constant 0 : i32
    %c0_i32_1 = arith.constant 0 : i32
    return %arg0, %c0_i32, %c0_i32_0 : i32, i32, i32
  }
}

module attributes {stable_mosaic.version = 11 : i64} {
  func.func @_bnrelu_kernel(%arg0: i32, %arg1: memref<1x8x256xbf16, #tpu.memory_space<vmem>>, %arg2: memref<8x1xf32, #tpu.memory_space<vmem>>, %arg3: memref<8x1xf32, #tpu.memory_space<vmem>>, %arg4: memref<1x8x256xf32, #tpu.memory_space<vmem>>) attributes {dimension_semantics = [#tpu.dimension_semantics<parallel>], iteration_bounds = array<i64: 2>, scalar_prefetch = 0 : i64, scratch_operands = 0 : i64, tpu.core_type = #tpu.core_type<tc>, window_params = [{transform_indices = @transform_0, window_bounds = array<i64: 1, 8, 256>}, {pipeline_mode = #tpu.pipeline_mode<synchronous>, transform_indices = @transform_1, window_bounds = array<i64: 8, 1>}, {pipeline_mode = #tpu.pipeline_mode<synchronous>, transform_indices = @transform_2, window_bounds = array<i64: 8, 1>}, {transform_indices = @transform_3, window_bounds = array<i64: 1, 8, 256>}]} {
    %c0 = arith.constant 0 : index
    %c0_0 = arith.constant 0 : index
    %c0_1 = arith.constant 0 : index
    %0 = vector.load %arg1[%c0, %c0_0, %c0_1] : memref<1x8x256xbf16, #tpu.memory_space<vmem>>, vector<1x8x256xbf16>
    %1 = vector.shape_cast %0 : vector<1x8x256xbf16> to vector<8x256xbf16>
    %2 = arith.extf %1 : vector<8x256xbf16> to vector<8x256xf32>
    %c0_2 = arith.constant 0 : index
    %c0_3 = arith.constant 0 : index
    %3 = vector.load %arg2[%c0_2, %c0_3] : memref<8x1xf32, #tpu.memory_space<vmem>>, vector<8x1xf32>
    %4 = vector.broadcast %3 : vector<8x1xf32> to vector<8x256xf32>
    %5 = arith.mulf %2, %4 : vector<8x256xf32>
    %c0_4 = arith.constant 0 : index
    %c0_5 = arith.constant 0 : index
    %6 = vector.load %arg3[%c0_4, %c0_5] : memref<8x1xf32, #tpu.memory_space<vmem>>, vector<8x1xf32>
    %7 = vector.broadcast %6 : vector<8x1xf32> to vector<8x256xf32>
    %8 = arith.addf %5, %7 : vector<8x256xf32>
    %cst = arith.constant 0.000000e+00 : f32
    %9 = vector.broadcast %cst : f32 to vector<8x256xf32>
    %10 = arith.maximumf %8, %9 : vector<8x256xf32>
    %c0_6 = arith.constant 0 : index
    %c0_7 = arith.constant 0 : index
    %c0_8 = arith.constant 0 : index
    %11 = vector.load %arg4[%c0_6, %c0_7, %c0_8] : memref<1x8x256xf32, #tpu.memory_space<vmem>>, vector<1x8x256xf32>
    %12 = vector.shape_cast %11 : vector<1x8x256xf32> to vector<8x256xf32>
    %13 = vector.shape_cast %10 : vector<8x256xf32> to vector<1x8x256xf32>
    tpu.vector_store %arg4[%c0_6, %c0_7, %c0_8], %13 {strides = array<i32>} : memref<1x8x256xf32, #tpu.memory_space<vmem>>, vector<1x8x256xf32>,
    return
  }
  func.func @transform_0(%arg0: i32) -> (i32, i32, i32) {
    %c0_i32 = arith.constant 0 : i32
    %c0_i32_0 = arith.constant 0 : i32
    %c0_i32_1 = arith.constant 0 : i32
    return %arg0, %c0_i32, %c0_i32_0 : i32, i32, i32
  }
  func.func @transform_1(%arg0: i32) -> (i32, i32) {
    %c0_i32 = arith.constant 0 : i32
    %c0_i32_0 = arith.constant 0 : i32
    %c0_i32_1 = arith.constant 0 : i32
    return %c0_i32, %c0_i32_0 : i32, i32
  }
  func.func @transform_2(%arg0: i32) -> (i32, i32) {
    %c0_i32 = arith.constant 0 : i32
    %c0_i32_0 = arith.constant 0 : i32
    %c0_i32_1 = arith.constant 0 : i32
    return %c0_i32, %c0_i32_0 : i32, i32
  }
  func.func @transform_3(%arg0: i32) -> (i32, i32, i32) {
    %c0_i32 = arith.constant 0 : i32
    %c0_i32_0 = arith.constant 0 : i32
    %c0_i32_1 = arith.constant 0 : i32
    return %arg0, %c0_i32, %c0_i32_0 : i32, i32, i32
  }
}

</mosaic_0001>

<llo_original>
// kernel: double_conv.5
$region0: #{double_conv.5}
  #allocation0 [shape = 'u32[]', space=smem, size = 0x4, offset = 0x4, fixed_abs, tag = 'smem constant byte address 0x4 - core index']
  #allocation1 [shape = 'u32[144,128]{1,0:T(1,128)}', space=vmem, size = 0x12000, scoped, tag = 'internal scratch']
  %s0 = inlined_call_operand.vmem [shape: bf16[2,8,256], index: 0, kind: input, shape index: {}]
  %s1 = inlined_call_operand.vmem [shape: f32[8,1], index: 1, kind: input, shape index: {}]
  %s2 = inlined_call_operand.vmem [shape: f32[8,1], index: 2, kind: input, shape index: {}]
  %s3 = inlined_call_operand.vmem [shape: f32[2,8,256], index: 3, kind: output, shape index: {}]
  %s4 = sld [smem:[#allocation0]]
  $region45: #{double_conv.5} parent=0
    _
  %s6 = ssub.s32 1, %s4
  %s7 = scalar_select 0, %s6, %s4
  loop: start=0, step=1, limit=4
  $region2: #{double_conv.5} parent=0 // loop_pre_header
    _
  $region3: #{double_conv.5} parent=0 // loop_header
    %s9 = sphi 0, %s13
    %p10 = scmp.ge.s32.totalorder %s9, 4
    %s19 = sphi 0, %s21
    %s22 = sphi 0, %s19
    %s23 = sphi 0, %s22
    %s39 = sphi 0, %s23
    %s43 = sphi 0, %s43
    %s45 = sphi 0, %s43
    %s46 = sphi 0, %s45
    %s60 = sphi 0, %s46
    %s64 = sphi 0, %s64
    %s66 = sphi 0, %s64
    %s67 = sphi 0, %s66
    %s81 = sphi 0, %s67
    %s87 = sphi 0, %s89
    %s90 = sphi 0, %s87
    %s91 = sphi 0, %s90
    %s107 = sphi 0, %s91
  $region4: #{double_conv.5} parent=0 // loop_header_branch
    %12 = sbr.rel (%p10) target = $region8
  $region5: #{double_conv.5} parent=0 // loop_body
    %s14 = ssub.s32 %s9, 1
    %s15 = ssub.s32 %s9, 2
    %s16 = sadd.s32 %s9, 1
    %s17 = ssub.s32 %s9, %s16
    %p18 = scmp.eq.s32.totalorder %s17, 0
    %s20 = sadd.s32 %s19, 1
    %s21 = scalar_select %p18, %s19, %s20
    %p24 = pneg %p18
    %p25 = scmp.eq.s32.totalorder %s9, 1
    %p26 = por %p24, %p25
    %p27 = scmp.ne.s32.totalorder %s19, %s22
    %p28 = scmp.eq.s32.totalorder %s9, 0
    %p29 = por %p27, %p28
    %p30 = scmp.ne.s32.totalorder %s19, %s22
    %p31 = scmp.eq.s32.totalorder %s14, 1
    %p32 = por %p30, %p31
    %p33 = scmp.ne.s32.totalorder %s22, %s23
    %p34 = scmp.eq.s32.totalorder %s14, 0
    %p35 = por %p33, %p34
    %p36 = scmp.ne.s32.totalorder %s22, %s23
    %p37 = scmp.eq.s32.totalorder %s15, 1
    %p38 = por %p36, %p37
    %p40 = scmp.ne.s32.totalorder %s23, %s39
    %p41 = scmp.eq.s32.totalorder %s15, 0
    %p42 = por %p40, %p41
    %s44 = sadd.s32 %s43, 1
    %p47 = scmp.eq.s32.totalorder %s9, 1
    %p48 = scmp.ne.s32.totalorder %s43, %s45
    %p49 = scmp.eq.s32.totalorder %s9, 0
    %p50 = por %p48, %p49
    %p51 = scmp.ne.s32.totalorder %s43, %s45
    %p52 = scmp.eq.s32.totalorder %s14, 1
    %p53 = por %p51, %p52
    %p54 = scmp.ne.s32.totalorder %s45, %s46
    %p55 = scmp.eq.s32.totalorder %s14, 0
    %p56 = por %p54, %p55
    %p57 = scmp.ne.s32.totalorder %s45, %s46
    %p58 = scmp.eq.s32.totalorder %s15, 1
    %p59 = por %p57, %p58
    %p61 = scmp.ne.s32.totalorder %s46, %s60
    %p62 = scmp.eq.s32.totalorder %s15, 0
    %p63 = por %p61, %p62
    %s65 = sadd.s32 %s64, 1
    %p68 = scmp.eq.s32.totalorder %s9, 1
    %p69 = scmp.ne.s32.totalorder %s64, %s66
    %p70 = scmp.eq.s32.totalorder %s9, 0
    %p71 = por %p69, %p70
    %p72 = scmp.ne.s32.totalorder %s64, %s66
    %p73 = scmp.eq.s32.totalorder %s14, 1
    %p74 = por %p72, %p73
    %p75 = scmp.ne.s32.totalorder %s66, %s67
    %p76 = scmp.eq.s32.totalorder %s14, 0
    %p77 = por %p75, %p76
    %p78 = scmp.ne.s32.totalorder %s66, %s67
    %p79 = scmp.eq.s32.totalorder %s15, 1
    %p80 = por %p78, %p79
    %p82 = scmp.ne.s32.totalorder %s67, %s81
    %p83 = scmp.eq.s32.totalorder %s15, 0
    %p84 = por %p82, %p83
    %s85 = ssub.s32 %s9, %s16
    %p86 = scmp.eq.s32.totalorder %s85, 0
    %s88 = sadd.s32 %s87, 1
    %s89 = scalar_select %p86, %s87, %s88
    %p92 = pneg %p86
    %p93 = scmp.eq.s32.totalorder %s9, 1
    %p94 = por %p92, %p93
    %p95 = scmp.ne.s32.totalorder %s87, %s90
    %p96 = scmp.eq.s32.totalorder %s9, 0
    %p97 = por %p95, %p96
    %p98 = scmp.ne.s32.totalorder %s87, %s90
    %p99 = scmp.eq.s32.totalorder %s14, 1
    %p100 = por %p98, %p99
    %p101 = scmp.ne.s32.totalorder %s90, %s91
    %p102 = scmp.eq.s32.totalorder %s14, 0
    %p103 = por %p101, %p102
    %p104 = scmp.ne.s32.totalorder %s90, %s91
    %p105 = scmp.eq.s32.totalorder %s15, 1
    %p106 = por %p104, %p105
    %p108 = scmp.ne.s32.totalorder %s91, %s107
    %p109 = scmp.eq.s32.totalorder %s15, 0
    %p110 = por %p108, %p109
    %p111 = scmp.le.s32.totalorder 1, %s9
    %p112 = scmp.lt.s32.totalorder %s9, 3
    %p113 = pnand %p111, %p112
    %p114 = pneg %p113
    // Predicated region
    $region9: #{double_conv.5} parent=5 // pred_check
      _
    $region10: #{double_conv.5} parent=5 // pred_check_branch
      %116 = sbr.rel (%p113) target = $region12
    $region11: #{double_conv.5} parent=5 // pred_region
      %s117 = ssub.s32 %s9, 1
      // Predicated region
      $region13: #{double_conv.5} parent=11 // pred_check
        %p118 = pneg %p56
      $region14: #{double_conv.5} parent=11 // pred_check_branch
        %120 = sbr.rel (%p118) target = $region16
      $region15: #{double_conv.5} parent=11 // pred_region
        _
      $region16: #{double_conv.5} parent=11 // pred_fallthru
        _
      // Predicated region
      $region17: #{double_conv.5} parent=11 // pred_check
        %p121 = pneg %p77
      $region18: #{double_conv.5} parent=11 // pred_check_branch
        %123 = sbr.rel (%p121) target = $region20
      $region19: #{double_conv.5} parent=11 // pred_region
        _
      $region20: #{double_conv.5} parent=11 // pred_fallthru
        _
    $region12: #{double_conv.5} parent=5 // pred_fallthru
      _
    %p124 = scmp.lt.s32.totalorder %s9, 2
    // Predicated region
    $region21: #{double_conv.5} parent=5 // pred_check
      %p125 = pneg %p124
    $region22: #{double_conv.5} parent=5 // pred_check_branch
      %127 = sbr.rel (%p125) target = $region24
    $region23: #{double_conv.5} parent=5 // pred_region
      // Predicated region
      $region25: #{double_conv.5} parent=23 // pred_check
        %p128 = pneg %p29
      $region26: #{double_conv.5} parent=23 // pred_check_branch
        %130 = sbr.rel (%p128) target = $region28
      $region27: #{double_conv.5} parent=23 // pred_region
        %p131 = scmp.lt.s32.totalorder %s9, 1
        %s132 = scalar_select %p131, %s9, 1
        %s133 = smul.addr %s132, 2
        %s134 = smul.addr %s133, 4
        %s135 = scalar_lea.vmem %s0, %s134
      $region28: #{double_conv.5} parent=23 // pred_fallthru
        _
    $region24: #{double_conv.5} parent=5 // pred_fallthru
      _
    %p136 = scmp.le.s32.totalorder 1, %s9
    %p137 = scmp.lt.s32.totalorder %s9, 3
    %p138 = pnand %p136, %p137
    %p139 = pneg %p138
    // Predicated region
    $region29: #{double_conv.5} parent=5 // pred_check
      _
    $region30: #{double_conv.5} parent=5 // pred_check_branch
      %141 = sbr.rel (%p138) target = $region32
    $region31: #{double_conv.5} parent=5 // pred_region
      %s142 = ssub.s32 %s9, 1
      %p143 = scmp.lt.s32.totalorder %s14, 1
      %s144 = scalar_select %p143, %s14, 1
      %s145 = smul.addr %s144, 2
      %s146 = smul.addr %s145, 4
      %s147 = scalar_lea.vmem %s0, %s146
      %p148 = pneg %p35
      %p149 = pneg %p32
      %p150 = pneg %p56
      %p151 = pneg %p53
      %p152 = pneg %p77
      %p153 = pneg %p74
      %p154 = pneg %p103
      %p155 = pneg %p100
      %p156 = scmp.lt.s32.totalorder %s14, 1
      %s157 = scalar_select %p156, %s14, 1
      %s158 = smul.addr %s157, 2
      %s159 = smul.addr %s158, 8
      %s160 = scalar_lea.vmem %s3, %s159
      %p161 = scmp.lt.s32.totalorder %s14, 1
      %s162 = scalar_select %p161, %s14, 1
      %s163 = smul.addr %s162, 2
      %s164 = smul.addr %s163, 4
      %s165 = scalar_lea.vmem %s0, %s164
      %p166 = scmp.lt.s32.totalorder %s14, 1
      %s167 = scalar_select %p166, %s14, 1
      %s168 = smul.addr %s167, 2
      %s169 = smul.addr %s168, 8
      %s170 = scalar_lea.vmem %s3, %s169
      %v171 = vld [vmem:[%s165] sm:$0xff]
      %v172 = vunpack.c.l.bf16 %v171
      %v173 = vunpack.c.h.bf16 %v171
      %v174 = vld [vmem:[%s1] sm:$0xff]
      %176 = vset.pattern.permute.xlu0 0
      %177 = vperm.xlu0 %176, %v174
      %v178 = vpop.permute.xlu0 %177
      %v180 = vmul.f32 %v172, %v178
      %v181 = vmul.f32 %v173, %v178
      %v182 = vld [vmem:[%s2] sm:$0xff]
      %184 = vset.pattern.permute.xlu0 0
      %185 = vperm.xlu0 %184, %v182
      %v186 = vpop.permute.xlu0 %185
      %v188 = vadd.f32 %v180, %v186
      %v189 = vadd.f32 %v181, %v186
      %v190 = vmax.f32 %v188, 0.0
      %v191 = vmax.f32 %v189, 0.0
      %192 = vst [vmem:[%s170] sm:$0xff] %v190
      %193 = vst [vmem:[%s170 + $0x8] sm:$0xff] %v191
      %p194 = scmp.lt.s32.totalorder %s14, 1
      %s195 = scalar_select %p194, %s14, 1
      %s196 = smul.addr %s195, 2
      %s197 = smul.addr %s196, 8
      %s198 = scalar_lea.vmem %s3, %s197
      // Predicated region
      $region33: #{double_conv.5} parent=31 // pred_check
        %p199 = pneg %p100
      $region34: #{double_conv.5} parent=31 // pred_check_branch
        %201 = sbr.rel (%p199) target = $region36
      $region35: #{double_conv.5} parent=31 // pred_region
        _
      $region36: #{double_conv.5} parent=31 // pred_fallthru
        _
    $region32: #{double_conv.5} parent=5 // pred_fallthru
      _
    %p202 = scmp.le.s32.totalorder 2, %s9
    // Predicated region
    $region37: #{double_conv.5} parent=5 // pred_check
      %p203 = pneg %p202
    $region38: #{double_conv.5} parent=5 // pred_check_branch
      %205 = sbr.rel (%p203) target = $region40
    $region39: #{double_conv.5} parent=5 // pred_region
      %s206 = ssub.s32 %s9, 2
      // Predicated region
      $region41: #{double_conv.5} parent=39 // pred_check
        %p207 = pneg %p106
      $region42: #{double_conv.5} parent=39 // pred_check_branch
        %209 = sbr.rel (%p207) target = $region44
      $region43: #{double_conv.5} parent=39 // pred_region
        %p210 = scmp.lt.s32.totalorder %s15, 1
        %s211 = scalar_select %p210, %s15, 1
        %s212 = smul.addr %s211, 2
        %s213 = smul.addr %s212, 8
        %s214 = scalar_lea.vmem %s3, %s213
      $region44: #{double_conv.5} parent=39 // pred_fallthru
        _
    $region40: #{double_conv.5} parent=5 // pred_fallthru
      _
  $region6: #{double_conv.5} parent=0 // loop_footer
    %s13 = sadd.s32 1, %s9
  $region7: #{double_conv.5} parent=0 // loop_footer_branch
    %8 = sbr.rel target = $region3
  $region8: #{double_conv.5} parent=0 // loop_exit
    _

// kernel: double_conv.4
$region0: #{double_conv.4}
  #allocation0 [shape = 'u32[]', space=smem, size = 0x4, offset = 0x4, fixed_abs, tag = 'smem constant byte address 0x4 - core index']
  #allocation1 [shape = 'u32[144,128]{1,0:T(1,128)}', space=vmem, size = 0x12000, scoped, tag = 'internal scratch']
  #allocation2 [shape = 'bf16[72,256]{1,0:T(8,128)(2,1)}', space=vmem, size = 0x9000, scoped, tag = 'scratch operand']
  %s0 = inlined_call_operand.vmem [shape: bf16[2,8,256], index: 0, kind: input, shape index: {}]
  %s1 = inlined_call_operand.vmem [shape: f32[8,1], index: 1, kind: input, shape index: {}]
  %s2 = inlined_call_operand.vmem [shape: f32[8,1], index: 2, kind: input, shape index: {}]
  %s3 = inlined_call_operand.vmem [shape: f32[8,72], index: 3, kind: input, shape index: {}]
  %s4 = inlined_call_operand.vmem [shape: bf16[2,8,256], index: 4, kind: output, shape index: {0}]
  %s5 = inlined_call_operand.vmem [shape: f32[2,8,2], index: 5, kind: output, shape index: {1}]
  %6 = xla_tuple %s4, %s5
  %s7 = sld [smem:[#allocation0]]
  $region57: #{double_conv.4} parent=0
    _
  %s9 = ssub.s32 1, %s7
  %s10 = scalar_select 0, %s9, %s7
  loop: start=0, step=1, limit=4
  $region2: #{double_conv.4} parent=0 // loop_pre_header
    _
  $region3: #{double_conv.4} parent=0 // loop_header
    %s12 = sphi 0, %s16
    %p13 = scmp.ge.s32.totalorder %s12, 4
    %s22 = sphi 0, %s24
    %s25 = sphi 0, %s22
    %s26 = sphi 0, %s25
    %s42 = sphi 0, %s26
    %s46 = sphi 0, %s46
    %s48 = sphi 0, %s46
    %s49 = sphi 0, %s48
    %s63 = sphi 0, %s49
    %s67 = sphi 0, %s67
    %s69 = sphi 0, %s67
    %s70 = sphi 0, %s69
    %s84 = sphi 0, %s70
    %s88 = sphi 0, %s88
    %s90 = sphi 0, %s88
    %s91 = sphi 0, %s90
    %s105 = sphi 0, %s91
    %s111 = sphi 0, %s113
    %s114 = sphi 0, %s111
    %s115 = sphi 0, %s114
    %s131 = sphi 0, %s115
    %s137 = sphi 0, %s139
    %s140 = sphi 0, %s137
    %s141 = sphi 0, %s140
    %s157 = sphi 0, %s141
  $region4: #{double_conv.4} parent=0 // loop_header_branch
    %15 = sbr.rel (%p13) target = $region8
  $region5: #{double_conv.4} parent=0 // loop_body
    %s17 = ssub.s32 %s12, 1
    %s18 = ssub.s32 %s12, 2
    %s19 = sadd.s32 %s12, 1
    %s20 = ssub.s32 %s12, %s19
    %p21 = scmp.eq.s32.totalorder %s20, 0
    %s23 = sadd.s32 %s22, 1
    %s24 = scalar_select %p21, %s22, %s23
    %p27 = pneg %p21
    %p28 = scmp.eq.s32.totalorder %s12, 1
    %p29 = por %p27, %p28
    %p30 = scmp.ne.s32.totalorder %s22, %s25
    %p31 = scmp.eq.s32.totalorder %s12, 0
    %p32 = por %p30, %p31
    %p33 = scmp.ne.s32.totalorder %s22, %s25
    %p34 = scmp.eq.s32.totalorder %s17, 1
    %p35 = por %p33, %p34
    %p36 = scmp.ne.s32.totalorder %s25, %s26
    %p37 = scmp.eq.s32.totalorder %s17, 0
    %p38 = por %p36, %p37
    %p39 = scmp.ne.s32.totalorder %s25, %s26
    %p40 = scmp.eq.s32.totalorder %s18, 1
    %p41 = por %p39, %p40
    %p43 = scmp.ne.s32.totalorder %s26, %s42
    %p44 = scmp.eq.s32.totalorder %s18, 0
    %p45 = por %p43, %p44
    %s47 = sadd.s32 %s46, 1
    %p50 = scmp.eq.s32.totalorder %s12, 1
    %p51 = scmp.ne.s32.totalorder %s46, %s48
    %p52 = scmp.eq.s32.totalorder %s12, 0
    %p53 = por %p51, %p52
    %p54 = scmp.ne.s32.totalorder %s46, %s48
    %p55 = scmp.eq.s32.totalorder %s17, 1
    %p56 = por %p54, %p55
    %p57 = scmp.ne.s32.totalorder %s48, %s49
    %p58 = scmp.eq.s32.totalorder %s17, 0
    %p59 = por %p57, %p58
    %p60 = scmp.ne.s32.totalorder %s48, %s49
    %p61 = scmp.eq.s32.totalorder %s18, 1
    %p62 = por %p60, %p61
    %p64 = scmp.ne.s32.totalorder %s49, %s63
    %p65 = scmp.eq.s32.totalorder %s18, 0
    %p66 = por %p64, %p65
    %s68 = sadd.s32 %s67, 1
    %p71 = scmp.eq.s32.totalorder %s12, 1
    %p72 = scmp.ne.s32.totalorder %s67, %s69
    %p73 = scmp.eq.s32.totalorder %s12, 0
    %p74 = por %p72, %p73
    %p75 = scmp.ne.s32.totalorder %s67, %s69
    %p76 = scmp.eq.s32.totalorder %s17, 1
    %p77 = por %p75, %p76
    %p78 = scmp.ne.s32.totalorder %s69, %s70
    %p79 = scmp.eq.s32.totalorder %s17, 0
    %p80 = por %p78, %p79
    %p81 = scmp.ne.s32.totalorder %s69, %s70
    %p82 = scmp.eq.s32.totalorder %s18, 1
    %p83 = por %p81, %p82
    %p85 = scmp.ne.s32.totalorder %s70, %s84
    %p86 = scmp.eq.s32.totalorder %s18, 0
    %p87 = por %p85, %p86
    %s89 = sadd.s32 %s88, 1
    %p92 = scmp.eq.s32.totalorder %s12, 1
    %p93 = scmp.ne.s32.totalorder %s88, %s90
    %p94 = scmp.eq.s32.totalorder %s12, 0
    %p95 = por %p93, %p94
    %p96 = scmp.ne.s32.totalorder %s88, %s90
    %p97 = scmp.eq.s32.totalorder %s17, 1
    %p98 = por %p96, %p97
    %p99 = scmp.ne.s32.totalorder %s90, %s91
    %p100 = scmp.eq.s32.totalorder %s17, 0
    %p101 = por %p99, %p100
    %p102 = scmp.ne.s32.totalorder %s90, %s91
    %p103 = scmp.eq.s32.totalorder %s18, 1
    %p104 = por %p102, %p103
    %p106 = scmp.ne.s32.totalorder %s91, %s105
    %p107 = scmp.eq.s32.totalorder %s18, 0
    %p108 = por %p106, %p107
    %s109 = ssub.s32 %s12, %s19
    %p110 = scmp.eq.s32.totalorder %s109, 0
    %s112 = sadd.s32 %s111, 1
    %s113 = scalar_select %p110, %s111, %s112
    %p116 = pneg %p110
    %p117 = scmp.eq.s32.totalorder %s12, 1
    %p118 = por %p116, %p117
    %p119 = scmp.ne.s32.totalorder %s111, %s114
    %p120 = scmp.eq.s32.totalorder %s12, 0
    %p121 = por %p119, %p120
    %p122 = scmp.ne.s32.totalorder %s111, %s114
    %p123 = scmp.eq.s32.totalorder %s17, 1
    %p124 = por %p122, %p123
    %p125 = scmp.ne.s32.totalorder %s114, %s115
    %p126 = scmp.eq.s32.totalorder %s17, 0
    %p127 = por %p125, %p126
    %p128 = scmp.ne.s32.totalorder %s114, %s115
    %p129 = scmp.eq.s32.totalorder %s18, 1
    %p130 = por %p128, %p129
    %p132 = scmp.ne.s32.totalorder %s115, %s131
    %p133 = scmp.eq.s32.totalorder %s18, 0
    %p134 = por %p132, %p133
    %s135 = ssub.s32 %s12, %s19
    %p136 = scmp.eq.s32.totalorder %s135, 0
    %s138 = sadd.s32 %s137, 1
    %s139 = scalar_select %p136, %s137, %s138
    %p142 = pneg %p136
    %p143 = scmp.eq.s32.totalorder %s12, 1
    %p144 = por %p142, %p143
    %p145 = scmp.ne.s32.totalorder %s137, %s140
    %p146 = scmp.eq.s32.totalorder %s12, 0
    %p147 = por %p145, %p146
    %p148 = scmp.ne.s32.totalorder %s137, %s140
    %p149 = scmp.eq.s32.totalorder %s17, 1
    %p150 = por %p148, %p149
    %p151 = scmp.ne.s32.totalorder %s140, %s141
    %p152 = scmp.eq.s32.totalorder %s17, 0
    %p153 = por %p151, %p152
    %p154 = scmp.ne.s32.totalorder %s140, %s141
    %p155 = scmp.eq.s32.totalorder %s18, 1
    %p156 = por %p154, %p155
    %p158 = scmp.ne.s32.totalorder %s141, %s157
    %p159 = scmp.eq.s32.totalorder %s18, 0
    %p160 = por %p158, %p159
    %p161 = scmp.le.s32.totalorder 1, %s12
    %p162 = scmp.lt.s32.totalorder %s12, 3
    %p163 = pnand %p161, %p162
    %p164 = pneg %p163
    // Predicated region
    $region9: #{double_conv.4} parent=5 // pred_check
      _
    $region10: #{double_conv.4} parent=5 // pred_check_branch
      %166 = sbr.rel (%p163) target = $region12
    $region11: #{double_conv.4} parent=5 // pred_region
      %s167 = ssub.s32 %s12, 1
      // Predicated region
      $region13: #{double_conv.4} parent=11 // pred_check
        %p168 = pneg %p59
      $region14: #{double_conv.4} parent=11 // pred_check_branch
        %170 = sbr.rel (%p168) target = $region16
      $region15: #{double_conv.4} parent=11 // pred_region
        _
      $region16: #{double_conv.4} parent=11 // pred_fallthru
        _
      // Predicated region
      $region17: #{double_conv.4} parent=11 // pred_check
        %p171 = pneg %p80
      $region18: #{double_conv.4} parent=11 // pred_check_branch
        %173 = sbr.rel (%p171) target = $region20
      $region19: #{double_conv.4} parent=11 // pred_region
        _
      $region20: #{double_conv.4} parent=11 // pred_fallthru
        _
      // Predicated region
      $region21: #{double_conv.4} parent=11 // pred_check
        %p174 = pneg %p101
      $region22: #{double_conv.4} parent=11 // pred_check_branch
        %176 = sbr.rel (%p174) target = $region24
      $region23: #{double_conv.4} parent=11 // pred_region
        _
      $region24: #{double_conv.4} parent=11 // pred_fallthru
        _
    $region12: #{double_conv.4} parent=5 // pred_fallthru
      _
    %p177 = scmp.lt.s32.totalorder %s12, 2
    // Predicated region
    $region25: #{double_conv.4} parent=5 // pred_check
      %p178 = pneg %p177
    $region26: #{double_conv.4} parent=5 // pred_check_branch
      %180 = sbr.rel (%p178) target = $region28
    $region27: #{double_conv.4} parent=5 // pred_region
      // Predicated region
      $region29: #{double_conv.4} parent=27 // pred_check
        %p181 = pneg %p32
      $region30: #{double_conv.4} parent=27 // pred_check_branch
        %183 = sbr.rel (%p181) target = $region32
      $region31: #{double_conv.4} parent=27 // pred_region
        %p184 = scmp.lt.s32.totalorder %s12, 1
        %s185 = scalar_select %p184, %s12, 1
        %s186 = smul.addr %s185, 2
        %s187 = smul.addr %s186, 4
        %s188 = scalar_lea.vmem %s0, %s187
      $region32: #{double_conv.4} parent=27 // pred_fallthru
        _
    $region28: #{double_conv.4} parent=5 // pred_fallthru
      _
    %p189 = scmp.le.s32.totalorder 1, %s12
    %p190 = scmp.lt.s32.totalorder %s12, 3
    %p191 = pnand %p189, %p190
    %p192 = pneg %p191
    // Predicated region
    $region33: #{double_conv.4} parent=5 // pred_check
      _
    $region34: #{double_conv.4} parent=5 // pred_check_branch
      %194 = sbr.rel (%p191) target = $region36
    $region35: #{double_conv.4} parent=5 // pred_region
      %s195 = ssub.s32 %s12, 1
      %p196 = scmp.lt.s32.totalorder %s17, 1
      %s197 = scalar_select %p196, %s17, 1
      %s198 = smul.addr %s197, 2
      %s199 = smul.addr %s198, 4
      %s200 = scalar_lea.vmem %s0, %s199
      %p201 = pneg %p38
      %p202 = pneg %p35
      %p203 = pneg %p59
      %p204 = pneg %p56
      %p205 = pneg %p80
      %p206 = pneg %p77
      %p207 = pneg %p101
      %p208 = pneg %p98
      %p209 = pneg %p127
      %p210 = pneg %p124
      %p211 = scmp.lt.s32.totalorder %s17, 1
      %s212 = scalar_select %p211, %s17, 1
      %s213 = smul.addr %s212, 2
      %s214 = smul.addr %s213, 4
      %s215 = scalar_lea.vmem %s4, %s214
      %p216 = pneg %p153
      %p217 = pneg %p150
      %p218 = scmp.lt.s32.totalorder %s17, 1
      %s219 = scalar_select %p218, %s17, 1
      %s220 = smul.addr %s219, 8
      %s221 = scalar_lea.vmem %s5, %s220
      %p222 = scmp.lt.s32.totalorder %s17, 1
      %s223 = scalar_select %p222, %s17, 1
      %s224 = smul.addr %s223, 2
      %s225 = smul.addr %s224, 4
      %s226 = scalar_lea.vmem %s0, %s225
      %p227 = scmp.lt.s32.totalorder %s17, 1
      %s228 = scalar_select %p227, %s17, 1
      %s229 = smul.addr %s228, 2
      %s230 = smul.addr %s229, 4
      %s231 = scalar_lea.vmem %s4, %s230
      %p232 = scmp.lt.s32.totalorder %s17, 1
      %s233 = scalar_select %p232, %s17, 1
      %s234 = smul.addr %s233, 8
      %s235 = scalar_lea.vmem %s5, %s234
      %v237 = vld [vmem:[%s226] sm:$0xff]
      %v238 = vunpack.c.l.bf16 %v237
      %v239 = vunpack.c.h.bf16 %v237
      %v240 = vld [vmem:[%s1] sm:$0xff]
      %242 = vset.pattern.permute.xlu0 0
      %243 = vperm.xlu0 %242, %v240
      %v244 = vpop.permute.xlu0 %243
      %v246 = vmul.f32 %v238, %v244
      %v247 = vmul.f32 %v239, %v244
      %v248 = vld [vmem:[%s2] sm:$0xff]
      %250 = vset.pattern.permute.xlu0 0
      %251 = vperm.xlu0 %250, %v248
      %v252 = vpop.permute.xlu0 %251
      %v254 = vadd.f32 %v246, %v252
      %v255 = vadd.f32 %v247, %v252
      %v256 = vmax.f32 %v254, 0.0
      %v257 = vmax.f32 %v255, 0.0
      %v258 = vlaneseq
      %v259 = vand.u32 %v258, 127
      %v260 = vadd.s32 %v259, 128
      %vm261 = vcmp.lt.s32.totalorder %v259, 0
      %v262 = vsub.s32 0, %v259
      %v263 = vsel %vm261, %v262, %v259
      %v264 = vshrl.u32 %v263, 4
      %v265 = vand.u32 %v263, 15
      %v266 = vsub.s32 0, %v265
      %v267 = vsel %vm261, %v266, %v265
      %vm268 = vcmp.lt.s32.totalorder %v260, 0
      %v269 = vsub.s32 0, %v260
      %v270 = vsel %vm268, %v269, %v260
      %v271 = vshrl.u32 %v270, 4
      %v272 = vand.u32 %v270, 15
      %v273 = vsub.s32 0, %v272
      %v274 = vsel %vm268, %v273, %v272
      %vm275 = vcmp.ne.s32.totalorder %v267, 0
      %vm276 = vcmp.ne.s32.totalorder %v274, 0
      %vm277 = vcmp.lt.s32.totalorder %v267, 0
      %vm278 = vcmp.lt.s32.totalorder %v274, 0
      %vm279 = vmand %vm277, %vm275
      %vm280 = vmand %vm278, %vm276
      %v281 = vadd.s32 %v267, 16
      %v282 = vadd.s32 %v274, 16
      %v283 = vsel %vm279, %v281, %v267
      %v284 = vsel %vm280, %v282, %v274
      %285 = vrot.lane.b32.xlu0 %v256, 17
      %v286 = vpop.permute.xlu0 %285
      %287 = vrot.lane.b32.xlu0 %v257, 17
      %v288 = vpop.permute.xlu0 %287
      %vm289 = vcmp.lt.s32.totalorder %v259, 17
      %v290 = vsel %vm289, %v286, %v288
      %v291 = vsel %vm289, %v288, %v286
      %vm292 = vcmp.ge.s32.totalorder %v283, 1
      %vm293 = vcmp.ge.s32.totalorder %v284, 1
      %vm294 = vcmp.ge.s32.totalorder %v259, 16
      %vm295 = vcmp.ge.s32.totalorder %v260, 16
      %vm296 = vmand %vm292, %vm294
      %vm297 = vmand %vm293, %vm295
      %v298 = vsel %vm296, %v291, 0.0
      %v299 = vsel %vm297, %v290, 0.0
      %v300 = vpack.c.bf16 %v298, %v298
      %v301 = vpack.c.bf16 %v299, %v299
      %v304 = vunpack.c.l.b16 %v300
      %v305 = vunpack.c.l.b16 %v301
      %v306 = vpack.c.b16 %v305, %v304
      %308 = vst [vmem:[#allocation2] sm:$0xff] %v306
      %309 = vrot.lane.b32.xlu0 %v256, 16
      %v310 = vpop.permute.xlu0 %309
      %311 = vrot.lane.b32.xlu0 %v257, 16
      %v312 = vpop.permute.xlu0 %311
      %vm313 = vcmp.lt.s32.totalorder %v259, 16
      %v314 = vsel %vm313, %v310, %v312
      %v315 = vsel %vm313, %v312, %v310
      %v316 = vsel %vm294, %v315, 0.0
      %v317 = vsel %vm295, %v314, 0.0
      %v318 = vpack.c.bf16 %v316, %v316
      %v319 = vpack.c.bf16 %v317, %v317
      %v322 = vunpack.c.l.b16 %v318
      %v323 = vunpack.c.l.b16 %v319
      %v324 = vpack.c.b16 %v323, %v322
      %326 = vst [vmem:[#allocation2 + $0x8] sm:$0xff] %v324
      %327 = vrot.lane.b32.xlu0 %v256, 15
      %v328 = vpop.permute.xlu0 %327
      %329 = vrot.lane.b32.xlu0 %v257, 15
      %v330 = vpop.permute.xlu0 %329
      %vm331 = vcmp.lt.s32.totalorder %v259, 15
      %v332 = vsel %vm331, %v328, %v330
      %v333 = vsel %vm331, %v330, %v328
      %vm334 = vcmp.le.s32.totalorder %v283, 14
      %vm335 = vcmp.le.s32.totalorder %v284, 14
      %vm336 = vmand %vm334, %vm294
      %vm337 = vmand %vm335, %vm295
      %v338 = vsel %vm336, %v333, 0.0
      %v339 = vsel %vm337, %v332, 0.0
      %v340 = vpack.c.bf16 %v338, %v338
      %v341 = vpack.c.bf16 %v339, %v339
      %v344 = vunpack.c.l.b16 %v340
      %v345 = vunpack.c.l.b16 %v341
      %v346 = vpack.c.b16 %v345, %v344
      %348 = vst [vmem:[#allocation2 + $0x10] sm:$0xff] %v346
      %349 = vrot.lane.b32.xlu0 %v256, 1
      %v350 = vpop.permute.xlu0 %349
      %351 = vrot.lane.b32.xlu0 %v257, 1
      %v352 = vpop.permute.xlu0 %351
      %vm353 = vcmp.lt.s32.totalorder %v259, 1
      %v354 = vsel %vm353, %v350, %v352
      %v355 = vsel %vm353, %v352, %v350
      %v356 = vsel %vm292, %v355, 0.0
      %v357 = vsel %vm293, %v354, 0.0
      %v358 = vpack.c.bf16 %v356, %v356
      %v359 = vpack.c.bf16 %v357, %v357
      %v362 = vunpack.c.l.b16 %v358
      %v363 = vunpack.c.l.b16 %v359
      %v364 = vpack.c.b16 %v363, %v362
      %366 = vst [vmem:[#allocation2 + $0x18] sm:$0xff] %v364
      %v367 = vpack.c.bf16 %v256, %v256
      %v368 = vpack.c.bf16 %v257, %v257
      %v371 = vunpack.c.l.b16 %v367
      %v372 = vunpack.c.l.b16 %v368
      %v373 = vpack.c.b16 %v372, %v371
      %375 = vst [vmem:[#allocation2 + $0x20] sm:$0xff] %v373
      %376 = vrot.lane.b32.xlu0 %v256, 127
      %v377 = vpop.permute.xlu0 %376
      %378 = vrot.lane.b32.xlu0 %v257, 127
      %v379 = vpop.permute.xlu0 %378
      %vm380 = vcmp.lt.s32.totalorder %v259, 127
      %v381 = vsel %vm380, %v377, %v379
      %v382 = vsel %vm380, %v379, %v377
      %v383 = vsel %vm334, %v381, 0.0
      %v384 = vsel %vm335, %v382, 0.0
      %v385 = vpack.c.bf16 %v383, %v383
      %v386 = vpack.c.bf16 %v384, %v384
      %v389 = vunpack.c.l.b16 %v385
      %v390 = vunpack.c.l.b16 %v386
      %v391 = vpack.c.b16 %v390, %v389
      %393 = vst [vmem:[#allocation2 + $0x28] sm:$0xff] %v391
      %394 = vrot.lane.b32.xlu0 %v256, 113
      %v395 = vpop.permute.xlu0 %394
      %396 = vrot.lane.b32.xlu0 %v257, 113
      %v397 = vpop.permute.xlu0 %396
      %vm398 = vcmp.lt.s32.totalorder %v259, 113
      %v399 = vsel %vm398, %v395, %v397
      %v400 = vsel %vm398, %v397, %v395
      %vm401 = vcmp.lt.s32.totalorder %v259, 240
      %vm402 = vcmp.lt.s32.totalorder %v260, 240
      %vm403 = vmand %vm292, %vm401
      %vm404 = vmand %vm293, %vm402
      %v405 = vsel %vm403, %v399, 0.0
      %v406 = vsel %vm404, %v400, 0.0
      %v407 = vpack.c.bf16 %v405, %v405
      %v408 = vpack.c.bf16 %v406, %v406
      %v411 = vunpack.c.l.b16 %v407
      %v412 = vunpack.c.l.b16 %v408
      %v413 = vpack.c.b16 %v412, %v411
      %415 = vst [vmem:[#allocation2 + $0x30] sm:$0xff] %v413
      %416 = vrot.lane.b32.xlu0 %v256, 112
      %v417 = vpop.permute.xlu0 %416
      %418 = vrot.lane.b32.xlu0 %v257, 112
      %v419 = vpop.permute.xlu0 %418
      %vm420 = vcmp.lt.s32.totalorder %v259, 112
      %v421 = vsel %vm420, %v417, %v419
      %v422 = vsel %vm420, %v419, %v417
      %v423 = vsel %vm401, %v421, 0.0
      %v424 = vsel %vm402, %v422, 0.0
      %v425 = vpack.c.bf16 %v423, %v423
      %v426 = vpack.c.bf16 %v424, %v424
      %v429 = vunpack.c.l.b16 %v425
      %v430 = vunpack.c.l.b16 %v426
      %v431 = vpack.c.b16 %v430, %v429
      %433 = vst [vmem:[#allocation2 + $0x38] sm:$0xff] %v431
      %434 = vrot.lane.b32.xlu0 %v256, 111
      %v435 = vpop.permute.xlu0 %434
      %436 = vrot.lane.b32.xlu0 %v257, 111
      %v437 = vpop.permute.xlu0 %436
      %vm438 = vcmp.lt.s32.totalorder %v259, 111
      %v439 = vsel %vm438, %v435, %v437
      %v440 = vsel %vm438, %v437, %v435
      %vm441 = vmand %vm334, %vm401
      %vm442 = vmand %vm335, %vm402
      %v443 = vsel %vm441, %v439, 0.0
      %v444 = vsel %vm442, %v440, 0.0
      %v445 = vpack.c.bf16 %v443, %v443
      %v446 = vpack.c.bf16 %v444, %v444
      %v449 = vunpack.c.l.b16 %v445
      %v450 = vunpack.c.l.b16 %v446
      %v451 = vpack.c.b16 %v450, %v449
      %453 = vst [vmem:[#allocation2 + $0x40] sm:$0xff] %v451
      %v454 = vld [vmem:[%s3] sm:$0xff]
      %v455 = vpack.c.bf16 %v454, %v454
      %v456 = vld [vmem:[#allocation2] sm:$0xff]
      %v457 = vld [vmem:[#allocation2 + $0x8] sm:$0xff]
      %v458 = vld [vmem:[#allocation2 + $0x10] sm:$0xff]
      %v459 = vld [vmem:[#allocation2 + $0x18] sm:$0xff]
      %v460 = vld [vmem:[#allocation2 + $0x20] sm:$0xff]
      %v461 = vld [vmem:[#allocation2 + $0x28] sm:$0xff]
      %v462 = vld [vmem:[#allocation2 + $0x30] sm:$0xff]
      %v463 = vld [vmem:[#allocation2 + $0x38] sm:$0xff]
      %v464 = vld [vmem:[#allocation2 + $0x40] sm:$0xff]
      %v474 = vunpack.c.l.b16 %v456
      %v475 = vunpack.c.h.b16 %v456
      %v476 = vunpack.c.l.b16 %v457
      %v477 = vunpack.c.h.b16 %v457
      %v478 = vunpack.c.l.b16 %v458
      %v479 = vunpack.c.h.b16 %v458
      %v480 = vunpack.c.l.b16 %v459
      %v481 = vunpack.c.h.b16 %v459
      %v482 = vunpack.c.l.b16 %v460
      %v483 = vunpack.c.h.b16 %v460
      %v484 = vunpack.c.l.b16 %v461
      %v485 = vunpack.c.h.b16 %v461
      %v486 = vunpack.c.l.b16 %v462
      %v487 = vunpack.c.h.b16 %v462
      %v488 = vunpack.c.l.b16 %v463
      %v489 = vunpack.c.h.b16 %v463
      %v490 = vunpack.c.l.b16 %v464
      %v491 = vunpack.c.h.b16 %v464
      %v492 = vpack.c.b16 %v476, %v474
      %v493 = vpack.c.b16 %v477, %v475
      %v494 = vpack.c.b16 %v480, %v478
      %v495 = vpack.c.b16 %v481, %v479
      %v496 = vpack.c.b16 %v484, %v482
      %v497 = vpack.c.b16 %v485, %v483
      %v498 = vpack.c.b16 %v488, %v486
      %v499 = vpack.c.b16 %v489, %v487
      %v500 = vpack.c.b16 %v490, %v490
      %v501 = vpack.c.b16 %v491, %v491
      %vm510 = vcmask 588800
      %v512 = vsel %vm510, %v455, 0
      %vm514 = vcmask 1043456
      %v516 = vsel %vm514, %v500, 0
      %v519 = vsel %vm514, %v501, 0
      %521 = vmatprep.subr.bf16.mxu0 0
      %522 = vmatpush1.bf16.msra.mxu0 0
      %523 = vmatprep.subr.bf16.mxu0 0
      %524 = vmatpush1.bf16.msra.mxu0 0
      %525 = vmatprep.subr.bf16.mxu0 0
      %526 = vmatpush1.bf16.msra.mxu0 0
      %527 = vmatprep.subr.bf16.mxu0 %v519
      %528 = vmatpush1.bf16.msra.mxu0 %v516
      %529 = vmatprep.subr.bf16.mxu0 %v499
      %530 = vmatpush1.bf16.msra.mxu0 %v498
      %531 = vmatprep.subr.bf16.mxu0 %v497
      %532 = vmatpush1.bf16.msra.mxu0 %v496
      %533 = vmatprep.subr.bf16.mxu0 %v495
      %534 = vmatpush1.bf16.msra.mxu0 %v494
      %535 = vmatprep.subr.bf16.mxu0 %v493
      %536 = vmatpush1.bf16.msra.mxu0 %v492
      %537 = vmatprep.subr.bf16.mxu0 0
      %538 = vmatpush2.bf16.msra.mxu0 0
      %539 = vmatprep.subr.bf16.mxu0 0
      %540 = vmatpush2.bf16.msra.mxu0 0
      %541 = vmatprep.subr.bf16.mxu0 0
      %542 = vmatpush2.bf16.msra.mxu0 0
      %543 = vmatprep.subr.bf16.mxu0 0
      %544 = vmatpush2.bf16.msra.mxu0 0
      %545 = vmatprep.subr.bf16.mxu0 0
      %546 = vmatpush2.bf16.msra.mxu0 0
      %547 = vmatprep.subr.bf16.mxu0 0
      %548 = vmatpush2.bf16.msra.mxu0 0
      %549 = vmatprep.subr.bf16.mxu0 0
      %550 = vmatpush2.bf16.msra.mxu0 0
      %551 = vmatprep.subr.bf16.mxu0 0
      %552 = vmatpush2.bf16.msra.mxu0 0
      %553 = vmatprep.mubr.bf16.mxu0 0
      %554 = vmatmul.mubr.bf16.gmra.mxu0 %v512
      %v555 = vpop.f32.mrf.mxu0
      %v556 = vadd.f32 0.0, %v555
      %v557 = vpop.f32.mrf.mxu0
      %v558 = vadd.f32 0.0, %v557
      %v559 = vpop.f32.mrf.mxu0
      %v560 = vpop.f32.mrf.mxu0
      %561 = vdwg.mxu0
      %v562 = vadd.f32 %v556, %v558
      %563 = vadd.xlane.f32.xlu0 %v562
      %v564 = vpop.xlane.xlu0 %563
      %v565 = vmul.f32 %v556, %v556
      %v566 = vmul.f32 %v558, %v558
      %v567 = vadd.f32 %v565, %v566
      %568 = vadd.xlane.f32.xlu0 %v567
      %v569 = vpop.xlane.xlu0 %568
      %vm570 = vcmask 7168
      %v571 = vsel %vm570, %v564, %v569
      %vm572 = vcmask 15360
      %573 = vst.msk [vmem:[%s235] sm:$0xff] %vm572, %v571
      %v574 = vpack.c.bf16 %v556, %v556
      %v575 = vpack.c.bf16 %v558, %v558
      %v578 = vunpack.c.l.b16 %v574
      %v579 = vunpack.c.l.b16 %v575
      %v580 = vpack.c.b16 %v579, %v578
      %582 = vst [vmem:[%s231] sm:$0xff] %v580
      %p583 = scmp.lt.s32.totalorder %s17, 1
      %s584 = scalar_select %p583, %s17, 1
      %s585 = smul.addr %s584, 2
      %s586 = smul.addr %s585, 4
      %s587 = scalar_lea.vmem %s4, %s586
      %p588 = scmp.lt.s32.totalorder %s17, 1
      %s589 = scalar_select %p588, %s17, 1
      %s590 = smul.addr %s589, 8
      %s591 = scalar_lea.vmem %s5, %s590
      // Predicated region
      $region37: #{double_conv.4} parent=35 // pred_check
        %p592 = pneg %p124
      $region38: #{double_conv.4} parent=35 // pred_check_branch
        %594 = sbr.rel (%p592) target = $region40
      $region39: #{double_conv.4} parent=35 // pred_region
        _
      $region40: #{double_conv.4} parent=35 // pred_fallthru
        _
      // Predicated region
      $region41: #{double_conv.4} parent=35 // pred_check
        %p595 = pneg %p150
      $region42: #{double_conv.4} parent=35 // pred_check_branch
        %597 = sbr.rel (%p595) target = $region44
      $region43: #{double_conv.4} parent=35 // pred_region
        _
      $region44: #{double_conv.4} parent=35 // pred_fallthru
        _
    $region36: #{double_conv.4} parent=5 // pred_fallthru
      _
    %p598 = scmp.le.s32.totalorder 2, %s12
    // Predicated region
    $region45: #{double_conv.4} parent=5 // pred_check
      %p599 = pneg %p598
    $region46: #{double_conv.4} parent=5 // pred_check_branch
      %601 = sbr.rel (%p599) target = $region48
    $region47: #{double_conv.4} parent=5 // pred_region
      %s602 = ssub.s32 %s12, 2
      // Predicated region
      $region49: #{double_conv.4} parent=47 // pred_check
        %p603 = pneg %p130
      $region50: #{double_conv.4} parent=47 // pred_check_branch
        %605 = sbr.rel (%p603) target = $region52
      $region51: #{double_conv.4} parent=47 // pred_region
        %p606 = scmp.lt.s32.totalorder %s18, 1
        %s607 = scalar_select %p606, %s18, 1
        %s608 = smul.addr %s607, 2
        %s609 = smul.addr %s608, 4
        %s610 = scalar_lea.vmem %s4, %s609
      $region52: #{double_conv.4} parent=47 // pred_fallthru
        _
      // Predicated region
      $region53: #{double_conv.4} parent=47 // pred_check
        %p611 = pneg %p156
      $region54: #{double_conv.4} parent=47 // pred_check_branch
        %613 = sbr.rel (%p611) target = $region56
      $region55: #{double_conv.4} parent=47 // pred_region
        %p614 = scmp.lt.s32.totalorder %s18, 1
        %s615 = scalar_select %p614, %s18, 1
        %s616 = smul.addr %s615, 8
        %s617 = scalar_lea.vmem %s5, %s616
      $region56: #{double_conv.4} parent=47 // pred_fallthru
        _
    $region48: #{double_conv.4} parent=5 // pred_fallthru
      _
  $region6: #{double_conv.4} parent=0 // loop_footer
    %s16 = sadd.s32 1, %s12
  $region7: #{double_conv.4} parent=0 // loop_footer_branch
    %11 = sbr.rel target = $region3
  $region8: #{double_conv.4} parent=0 // loop_exit
    _

// kernel: double_conv.3
$region0: #{double_conv.3}
  #allocation0 [shape = 'u32[]', space=smem, size = 0x4, offset = 0x4, fixed_abs, tag = 'smem constant byte address 0x4 - core index']
  #allocation1 [shape = 'u32[144,128]{1,0:T(1,128)}', space=vmem, size = 0x12000, scoped, tag = 'internal scratch']
  #allocation2 [shape = 'bf16[36,256]{1,0:T(8,128)(2,1)}', space=vmem, size = 0x5000, scoped, tag = 'scratch operand']
  %s0 = inlined_call_operand.vmem [shape: f32[2,4,256], index: 0, kind: input, shape index: {}]
  %s1 = inlined_call_operand.vmem [shape: f32[8,36], index: 1, kind: input, shape index: {}]
  %s2 = inlined_call_operand.vmem [shape: bf16[2,8,256], index: 2, kind: output, shape index: {0}]
  %s3 = inlined_call_operand.vmem [shape: f32[2,8,2], index: 3, kind: output, shape index: {1}]
  %4 = xla_tuple %s2, %s3
  %s5 = sld [smem:[#allocation0]]
  $region49: #{double_conv.3} parent=0
    _
  %s7 = ssub.s32 1, %s5
  %s8 = scalar_select 0, %s7, %s5
  loop: start=0, step=1, limit=4
  $region2: #{double_conv.3} parent=0 // loop_pre_header
    _
  $region3: #{double_conv.3} parent=0 // loop_header
    %s10 = sphi 0, %s14
    %p11 = scmp.ge.s32.totalorder %s10, 4
    %s20 = sphi 0, %s22
    %s23 = sphi 0, %s20
    %s24 = sphi 0, %s23
    %s40 = sphi 0, %s24
    %s44 = sphi 0, %s44
    %s46 = sphi 0, %s44
    %s47 = sphi 0, %s46
    %s61 = sphi 0, %s47
    %s67 = sphi 0, %s69
    %s70 = sphi 0, %s67
    %s71 = sphi 0, %s70
    %s87 = sphi 0, %s71
    %s93 = sphi 0, %s95
    %s96 = sphi 0, %s93
    %s97 = sphi 0, %s96
    %s113 = sphi 0, %s97
  $region4: #{double_conv.3} parent=0 // loop_header_branch
    %13 = sbr.rel (%p11) target = $region8
  $region5: #{double_conv.3} parent=0 // loop_body
    %s15 = ssub.s32 %s10, 1
    %s16 = ssub.s32 %s10, 2
    %s17 = sadd.s32 %s10, 1
    %s18 = ssub.s32 %s10, %s17
    %p19 = scmp.eq.s32.totalorder %s18, 0
    %s21 = sadd.s32 %s20, 1
    %s22 = scalar_select %p19, %s20, %s21
    %p25 = pneg %p19
    %p26 = scmp.eq.s32.totalorder %s10, 1
    %p27 = por %p25, %p26
    %p28 = scmp.ne.s32.totalorder %s20, %s23
    %p29 = scmp.eq.s32.totalorder %s10, 0
    %p30 = por %p28, %p29
    %p31 = scmp.ne.s32.totalorder %s20, %s23
    %p32 = scmp.eq.s32.totalorder %s15, 1
    %p33 = por %p31, %p32
    %p34 = scmp.ne.s32.totalorder %s23, %s24
    %p35 = scmp.eq.s32.totalorder %s15, 0
    %p36 = por %p34, %p35
    %p37 = scmp.ne.s32.totalorder %s23, %s24
    %p38 = scmp.eq.s32.totalorder %s16, 1
    %p39 = por %p37, %p38
    %p41 = scmp.ne.s32.totalorder %s24, %s40
    %p42 = scmp.eq.s32.totalorder %s16, 0
    %p43 = por %p41, %p42
    %s45 = sadd.s32 %s44, 1
    %p48 = scmp.eq.s32.totalorder %s10, 1
    %p49 = scmp.ne.s32.totalorder %s44, %s46
    %p50 = scmp.eq.s32.totalorder %s10, 0
    %p51 = por %p49, %p50
    %p52 = scmp.ne.s32.totalorder %s44, %s46
    %p53 = scmp.eq.s32.totalorder %s15, 1
    %p54 = por %p52, %p53
    %p55 = scmp.ne.s32.totalorder %s46, %s47
    %p56 = scmp.eq.s32.totalorder %s15, 0
    %p57 = por %p55, %p56
    %p58 = scmp.ne.s32.totalorder %s46, %s47
    %p59 = scmp.eq.s32.totalorder %s16, 1
    %p60 = por %p58, %p59
    %p62 = scmp.ne.s32.totalorder %s47, %s61
    %p63 = scmp.eq.s32.totalorder %s16, 0
    %p64 = por %p62, %p63
    %s65 = ssub.s32 %s10, %s17
    %p66 = scmp.eq.s32.totalorder %s65, 0
    %s68 = sadd.s32 %s67, 1
    %s69 = scalar_select %p66, %s67, %s68
    %p72 = pneg %p66
    %p73 = scmp.eq.s32.totalorder %s10, 1
    %p74 = por %p72, %p73
    %p75 = scmp.ne.s32.totalorder %s67, %s70
    %p76 = scmp.eq.s32.totalorder %s10, 0
    %p77 = por %p75, %p76
    %p78 = scmp.ne.s32.totalorder %s67, %s70
    %p79 = scmp.eq.s32.totalorder %s15, 1
    %p80 = por %p78, %p79
    %p81 = scmp.ne.s32.totalorder %s70, %s71
    %p82 = scmp.eq.s32.totalorder %s15, 0
    %p83 = por %p81, %p82
    %p84 = scmp.ne.s32.totalorder %s70, %s71
    %p85 = scmp.eq.s32.totalorder %s16, 1
    %p86 = por %p84, %p85
    %p88 = scmp.ne.s32.totalorder %s71, %s87
    %p89 = scmp.eq.s32.totalorder %s16, 0
    %p90 = por %p88, %p89
    %s91 = ssub.s32 %s10, %s17
    %p92 = scmp.eq.s32.totalorder %s91, 0
    %s94 = sadd.s32 %s93, 1
    %s95 = scalar_select %p92, %s93, %s94
    %p98 = pneg %p92
    %p99 = scmp.eq.s32.totalorder %s10, 1
    %p100 = por %p98, %p99
    %p101 = scmp.ne.s32.totalorder %s93, %s96
    %p102 = scmp.eq.s32.totalorder %s10, 0
    %p103 = por %p101, %p102
    %p104 = scmp.ne.s32.totalorder %s93, %s96
    %p105 = scmp.eq.s32.totalorder %s15, 1
    %p106 = por %p104, %p105
    %p107 = scmp.ne.s32.totalorder %s96, %s97
    %p108 = scmp.eq.s32.totalorder %s15, 0
    %p109 = por %p107, %p108
    %p110 = scmp.ne.s32.totalorder %s96, %s97
    %p111 = scmp.eq.s32.totalorder %s16, 1
    %p112 = por %p110, %p111
    %p114 = scmp.ne.s32.totalorder %s97, %s113
    %p115 = scmp.eq.s32.totalorder %s16, 0
    %p116 = por %p114, %p115
    %p117 = scmp.le.s32.totalorder 1, %s10
    %p118 = scmp.lt.s32.totalorder %s10, 3
    %p119 = pnand %p117, %p118
    %p120 = pneg %p119
    // Predicated region
    $region9: #{double_conv.3} parent=5 // pred_check
      _
    $region10: #{double_conv.3} parent=5 // pred_check_branch
      %122 = sbr.rel (%p119) target = $region12
    $region11: #{double_conv.3} parent=5 // pred_region
      %s123 = ssub.s32 %s10, 1
      // Predicated region
      $region13: #{double_conv.3} parent=11 // pred_check
        %p124 = pneg %p57
      $region14: #{double_conv.3} parent=11 // pred_check_branch
        %126 = sbr.rel (%p124) target = $region16
      $region15: #{double_conv.3} parent=11 // pred_region
        _
      $region16: #{double_conv.3} parent=11 // pred_fallthru
        _
    $region12: #{double_conv.3} parent=5 // pred_fallthru
      _
    %p127 = scmp.lt.s32.totalorder %s10, 2
    // Predicated region
    $region17: #{double_conv.3} parent=5 // pred_check
      %p128 = pneg %p127
    $region18: #{double_conv.3} parent=5 // pred_check_branch
      %130 = sbr.rel (%p128) target = $region20
    $region19: #{double_conv.3} parent=5 // pred_region
      // Predicated region
      $region21: #{double_conv.3} parent=19 // pred_check
        %p131 = pneg %p30
      $region22: #{double_conv.3} parent=19 // pred_check_branch
        %133 = sbr.rel (%p131) target = $region24
      $region23: #{double_conv.3} parent=19 // pred_region
        %p134 = scmp.lt.s32.totalorder %s10, 1
        %s135 = scalar_select %p134, %s10, 1
        %s136 = smul.addr %s135, 2
        %s137 = smul.addr %s136, 4
        %s138 = scalar_lea.vmem %s0, %s137
      $region24: #{double_conv.3} parent=19 // pred_fallthru
        _
    $region20: #{double_conv.3} parent=5 // pred_fallthru
      _
    %p139 = scmp.le.s32.totalorder 1, %s10
    %p140 = scmp.lt.s32.totalorder %s10, 3
    %p141 = pnand %p139, %p140
    %p142 = pneg %p141
    // Predicated region
    $region25: #{double_conv.3} parent=5 // pred_check
      _
    $region26: #{double_conv.3} parent=5 // pred_check_branch
      %144 = sbr.rel (%p141) target = $region28
    $region27: #{double_conv.3} parent=5 // pred_region
      %s145 = ssub.s32 %s10, 1
      %p146 = scmp.lt.s32.totalorder %s15, 1
      %s147 = scalar_select %p146, %s15, 1
      %s148 = smul.addr %s147, 2
      %s149 = smul.addr %s148, 4
      %s150 = scalar_lea.vmem %s0, %s149
      %p151 = pneg %p36
      %p152 = pneg %p33
      %p153 = pneg %p57
      %p154 = pneg %p54
      %p155 = pneg %p83
      %p156 = pneg %p80
      %p157 = scmp.lt.s32.totalorder %s15, 1
      %s158 = scalar_select %p157, %s15, 1
      %s159 = smul.addr %s158, 2
      %s160 = smul.addr %s159, 4
      %s161 = scalar_lea.vmem %s2, %s160
      %p162 = pneg %p109
      %p163 = pneg %p106
      %p164 = scmp.lt.s32.totalorder %s15, 1
      %s165 = scalar_select %p164, %s15, 1
      %s166 = smul.addr %s165, 8
      %s167 = scalar_lea.vmem %s3, %s166
      %p168 = scmp.lt.s32.totalorder %s15, 1
      %s169 = scalar_select %p168, %s15, 1
      %s170 = smul.addr %s169, 2
      %s171 = smul.addr %s170, 4
      %s172 = scalar_lea.vmem %s0, %s171
      %p173 = scmp.lt.s32.totalorder %s15, 1
      %s174 = scalar_select %p173, %s15, 1
      %s175 = smul.addr %s174, 2
      %s176 = smul.addr %s175, 4
      %s177 = scalar_lea.vmem %s2, %s176
      %p178 = scmp.lt.s32.totalorder %s15, 1
      %s179 = scalar_select %p178, %s15, 1
      %s180 = smul.addr %s179, 8
      %s181 = scalar_lea.vmem %s3, %s180
      %v183 = vld [vmem:[%s172] sm:$0xff]
      %v184 = vlaneseq
      %v185 = vand.u32 %v184, 127
      %v186 = vadd.s32 %v185, 128
      %vm187 = vcmp.lt.s32.totalorder %v185, 0
      %v188 = vsub.s32 0, %v185
      %v189 = vsel %vm187, %v188, %v185
      %v190 = vshrl.u32 %v189, 4
      %v191 = vand.u32 %v189, 15
      %v192 = vsub.s32 0, %v191
      %v193 = vsel %vm187, %v192, %v191
      %vm194 = vcmp.lt.s32.totalorder %v186, 0
      %v195 = vsub.s32 0, %v186
      %v196 = vsel %vm194, %v195, %v186
      %v197 = vshrl.u32 %v196, 4
      %v198 = vand.u32 %v196, 15
      %v199 = vsub.s32 0, %v198
      %v200 = vsel %vm194, %v199, %v198
      %vm201 = vcmp.ne.s32.totalorder %v193, 0
      %vm202 = vcmp.ne.s32.totalorder %v200, 0
      %vm203 = vcmp.lt.s32.totalorder %v193, 0
      %vm204 = vcmp.lt.s32.totalorder %v200, 0
      %vm205 = vmand %vm203, %vm201
      %vm206 = vmand %vm204, %vm202
      %v207 = vadd.s32 %v193, 16
      %v208 = vadd.s32 %v200, 16
      %v209 = vsel %vm205, %v207, %v193
      %v210 = vsel %vm206, %v208, %v200
      %v212 = vcombine.high %v183, %v183
      %214 = vrot.lane.b32.xlu0 %v183, 17
      %v215 = vpop.permute.xlu0 %214
      %216 = vrot.lane.b32.xlu0 %v212, 17
      %v217 = vpop.permute.xlu0 %216
      %vm218 = vcmp.lt.s32.totalorder %v185, 17
      %v219 = vsel %vm218, %v215, %v217
      %v220 = vsel %vm218, %v217, %v215
      %vm221 = vcmp.ge.s32.totalorder %v209, 1
      %vm222 = vcmp.ge.s32.totalorder %v210, 1
      %vm223 = vcmp.ge.s32.totalorder %v185, 16
      %vm224 = vcmp.ge.s32.totalorder %v186, 16
      %vm225 = vmand %vm221, %vm223
      %vm226 = vmand %vm222, %vm224
      %v227 = vsel %vm225, %v220, 0.0
      %v228 = vsel %vm226, %v219, 0.0
      %v229 = vpack.c.bf16 %v227, %v227
      %v230 = vpack.c.bf16 %v228, %v228
      %v233 = vunpack.c.l.b16 %v229
      %v234 = vunpack.c.l.b16 %v230
      %v235 = vpack.c.b16 %v234, %v233
      %237 = vst [vmem:[#allocation2] sm:$0x33] %v235
      %238 = vrot.lane.b32.xlu0 %v183, 16
      %v239 = vpop.permute.xlu0 %238
      %240 = vrot.lane.b32.xlu0 %v212, 16
      %v241 = vpop.permute.xlu0 %240
      %vm242 = vcmp.lt.s32.totalorder %v185, 16
      %v243 = vsel %vm242, %v239, %v241
      %v244 = vsel %vm242, %v241, %v239
      %v245 = vsel %vm223, %v244, 0.0
      %v246 = vsel %vm224, %v243, 0.0
      %v247 = vpack.c.bf16 %v245, %v245
      %v248 = vpack.c.bf16 %v246, %v246
      %v251 = vunpack.c.l.b16 %v247
      %v252 = vunpack.c.l.b16 %v248
      %v253 = vpack.c.b16 %v252, %v251
      %v254 = vrot.slane %v253, 6
      %256 = vst [vmem:[#allocation2] sm:$0xcc] %v254
      %257 = vrot.lane.b32.xlu0 %v183, 15
      %v258 = vpop.permute.xlu0 %257
      %259 = vrot.lane.b32.xlu0 %v212, 15
      %v260 = vpop.permute.xlu0 %259
      %vm261 = vcmp.lt.s32.totalorder %v185, 15
      %v262 = vsel %vm261, %v258, %v260
      %v263 = vsel %vm261, %v260, %v258
      %vm264 = vcmp.le.s32.totalorder %v209, 14
      %vm265 = vcmp.le.s32.totalorder %v210, 14
      %vm266 = vmand %vm264, %vm223
      %vm267 = vmand %vm265, %vm224
      %v268 = vsel %vm266, %v263, 0.0
      %v269 = vsel %vm267, %v262, 0.0
      %v270 = vpack.c.bf16 %v268, %v268
      %v271 = vpack.c.bf16 %v269, %v269
      %v274 = vunpack.c.l.b16 %v270
      %v275 = vunpack.c.l.b16 %v271
      %v276 = vpack.c.b16 %v275, %v274
      %278 = vst [vmem:[#allocation2 + $0x8] sm:$0x33] %v276
      %279 = vrot.lane.b32.xlu0 %v183, 1
      %v280 = vpop.permute.xlu0 %279
      %281 = vrot.lane.b32.xlu0 %v212, 1
      %v282 = vpop.permute.xlu0 %281
      %vm283 = vcmp.lt.s32.totalorder %v185, 1
      %v284 = vsel %vm283, %v280, %v282
      %v285 = vsel %vm283, %v282, %v280
      %v286 = vsel %vm221, %v285, 0.0
      %v287 = vsel %vm222, %v284, 0.0
      %v288 = vpack.c.bf16 %v286, %v286
      %v289 = vpack.c.bf16 %v287, %v287
      %v292 = vunpack.c.l.b16 %v288
      %v293 = vunpack.c.l.b16 %v289
      %v294 = vpack.c.b16 %v293, %v292
      %v295 = vrot.slane %v294, 6
      %297 = vst [vmem:[#allocation2 + $0x8] sm:$0xcc] %v295
      %v298 = vpack.c.bf16 %v183, %v183
      %v299 = vpack.c.bf16 %v212, %v212
      %v302 = vunpack.c.l.b16 %v298
      %v303 = vunpack.c.l.b16 %v299
      %v304 = vpack.c.b16 %v303, %v302
      %306 = vst [vmem:[#allocation2 + $0x10] sm:$0x33] %v304
      %307 = vrot.lane.b32.xlu0 %v183, 127
      %v308 = vpop.permute.xlu0 %307
      %309 = vrot.lane.b32.xlu0 %v212, 127
      %v310 = vpop.permute.xlu0 %309
      %vm311 = vcmp.lt.s32.totalorder %v185, 127
      %v312 = vsel %vm311, %v308, %v310
      %v313 = vsel %vm311, %v310, %v308
      %v314 = vsel %vm264, %v312, 0.0
      %v315 = vsel %vm265, %v313, 0.0
      %v316 = vpack.c.bf16 %v314, %v314
      %v317 = vpack.c.bf16 %v315, %v315
      %v320 = vunpack.c.l.b16 %v316
      %v321 = vunpack.c.l.b16 %v317
      %v322 = vpack.c.b16 %v321, %v320
      %v323 = vrot.slane %v322, 6
      %325 = vst [vmem:[#allocation2 + $0x10] sm:$0xcc] %v323
      %326 = vrot.lane.b32.xlu0 %v183, 113
      %v327 = vpop.permute.xlu0 %326
      %328 = vrot.lane.b32.xlu0 %v212, 113
      %v329 = vpop.permute.xlu0 %328
      %vm330 = vcmp.lt.s32.totalorder %v185, 113
      %v331 = vsel %vm330, %v327, %v329
      %v332 = vsel %vm330, %v329, %v327
      %vm333 = vcmp.lt.s32.totalorder %v185, 240
      %vm334 = vcmp.lt.s32.totalorder %v186, 240
      %vm335 = vmand %vm221, %vm333
      %vm336 = vmand %vm222, %vm334
      %v337 = vsel %vm335, %v331, 0.0
      %v338 = vsel %vm336, %v332, 0.0
      %v339 = vpack.c.bf16 %v337, %v337
      %v340 = vpack.c.bf16 %v338, %v338
      %v343 = vunpack.c.l.b16 %v339
      %v344 = vunpack.c.l.b16 %v340
      %v345 = vpack.c.b16 %v344, %v343
      %347 = vst [vmem:[#allocation2 + $0x18] sm:$0x33] %v345
      %348 = vrot.lane.b32.xlu0 %v183, 112
      %v349 = vpop.permute.xlu0 %348
      %350 = vrot.lane.b32.xlu0 %v212, 112
      %v351 = vpop.permute.xlu0 %350
      %vm352 = vcmp.lt.s32.totalorder %v185, 112
      %v353 = vsel %vm352, %v349, %v351
      %v354 = vsel %vm352, %v351, %v349
      %v355 = vsel %vm333, %v353, 0.0
      %v356 = vsel %vm334, %v354, 0.0
      %v357 = vpack.c.bf16 %v355, %v355
      %v358 = vpack.c.bf16 %v356, %v356
      %v361 = vunpack.c.l.b16 %v357
      %v362 = vunpack.c.l.b16 %v358
      %v363 = vpack.c.b16 %v362, %v361
      %v364 = vrot.slane %v363, 6
      %366 = vst [vmem:[#allocation2 + $0x18] sm:$0xcc] %v364
      %367 = vrot.lane.b32.xlu0 %v183, 111
      %v368 = vpop.permute.xlu0 %367
      %369 = vrot.lane.b32.xlu0 %v212, 111
      %v370 = vpop.permute.xlu0 %369
      %vm371 = vcmp.lt.s32.totalorder %v185, 111
      %v372 = vsel %vm371, %v368, %v370
      %v373 = vsel %vm371, %v370, %v368
      %vm374 = vmand %vm264, %vm333
      %vm375 = vmand %vm265, %vm334
      %v376 = vsel %vm374, %v372, 0.0
      %v377 = vsel %vm375, %v373, 0.0
      %v378 = vpack.c.bf16 %v376, %v376
      %v379 = vpack.c.bf16 %v377, %v377
      %v382 = vunpack.c.l.b16 %v378
      %v383 = vunpack.c.l.b16 %v379
      %v384 = vpack.c.b16 %v383, %v382
      %386 = vst [vmem:[#allocation2 + $0x20] sm:$0x33] %v384
      %v387 = vld [vmem:[%s1] sm:$0xff]
      %v388 = vpack.c.bf16 %v387, %v387
      %v389 = vld [vmem:[#allocation2] sm:$0xff]
      %v390 = vld [vmem:[#allocation2 + $0x8] sm:$0xff]
      %v391 = vld [vmem:[#allocation2 + $0x10] sm:$0xff]
      %v392 = vld [vmem:[#allocation2 + $0x18] sm:$0xff]
      %v393 = vld [vmem:[#allocation2 + $0x20] sm:$0x33]
      %v399 = vunpack.c.l.b16 %v389
      %v400 = vunpack.c.h.b16 %v389
      %v401 = vunpack.c.l.b16 %v390
      %v402 = vunpack.c.h.b16 %v390
      %v403 = vunpack.c.l.b16 %v391
      %v404 = vunpack.c.h.b16 %v391
      %v405 = vunpack.c.l.b16 %v392
      %v406 = vunpack.c.h.b16 %v392
      %v407 = vunpack.c.l.b16 %v393
      %v408 = vunpack.c.h.b16 %v393
      %v409 = vpack.c.b16 %v401, %v399
      %v410 = vpack.c.b16 %v402, %v400
      %v411 = vpack.c.b16 %v405, %v403
      %v412 = vpack.c.b16 %v406, %v404
      %v413 = vpack.c.b16 %v407, %v407
      %v414 = vpack.c.b16 %v408, %v408
      %vm419 = vcmask 293888
      %v421 = vsel %vm419, %v388, 0
      %vm423 = vcmask 1041408
      %v425 = vsel %vm423, %v413, 0
      %v428 = vsel %vm423, %v414, 0
      %430 = vmatprep.subr.bf16.mxu0 0
      %431 = vmatpush1.bf16.msra.mxu0 0
      %432 = vmatprep.subr.bf16.mxu0 0
      %433 = vmatpush1.bf16.msra.mxu0 0
      %434 = vmatprep.subr.bf16.mxu0 0
      %435 = vmatpush1.bf16.msra.mxu0 0
      %436 = vmatprep.subr.bf16.mxu0 0
      %437 = vmatpush1.bf16.msra.mxu0 0
      %438 = vmatprep.subr.bf16.mxu0 0
      %439 = vmatpush1.bf16.msra.mxu0 0
      %440 = vmatprep.subr.bf16.mxu0 %v428
      %441 = vmatpush1.bf16.msra.mxu0 %v425
      %442 = vmatprep.subr.bf16.mxu0 %v412
      %443 = vmatpush1.bf16.msra.mxu0 %v411
      %444 = vmatprep.subr.bf16.mxu0 %v410
      %445 = vmatpush1.bf16.msra.mxu0 %v409
      %446 = vmatprep.subr.bf16.mxu0 0
      %447 = vmatpush2.bf16.msra.mxu0 0
      %448 = vmatprep.subr.bf16.mxu0 0
      %449 = vmatpush2.bf16.msra.mxu0 0
      %450 = vmatprep.subr.bf16.mxu0 0
      %451 = vmatpush2.bf16.msra.mxu0 0
      %452 = vmatprep.subr.bf16.mxu0 0
      %453 = vmatpush2.bf16.msra.mxu0 0
      %454 = vmatprep.subr.bf16.mxu0 0
      %455 = vmatpush2.bf16.msra.mxu0 0
      %456 = vmatprep.subr.bf16.mxu0 0
      %457 = vmatpush2.bf16.msra.mxu0 0
      %458 = vmatprep.subr.bf16.mxu0 0
      %459 = vmatpush2.bf16.msra.mxu0 0
      %460 = vmatprep.subr.bf16.mxu0 0
      %461 = vmatpush2.bf16.msra.mxu0 0
      %462 = vmatprep.mubr.bf16.mxu0 0
      %463 = vmatmul.mubr.bf16.gmra.mxu0 %v421
      %v464 = vpop.f32.mrf.mxu0
      %v465 = vadd.f32 0.0, %v464
      %v466 = vpop.f32.mrf.mxu0
      %v467 = vadd.f32 0.0, %v466
      %v468 = vpop.f32.mrf.mxu0
      %v469 = vpop.f32.mrf.mxu0
      %470 = vdwg.mxu0
      %v471 = vadd.f32 %v465, %v467
      %472 = vadd.xlane.f32.xlu0 %v471
      %v473 = vpop.xlane.xlu0 %472
      %v474 = vmul.f32 %v465, %v465
      %v475 = vmul.f32 %v467, %v467
      %v476 = vadd.f32 %v474, %v475
      %477 = vadd.xlane.f32.xlu0 %v476
      %v478 = vpop.xlane.xlu0 %477
      %vm479 = vcmask 7168
      %v480 = vsel %vm479, %v473, %v478
      %vm481 = vcmask 15360
      %482 = vst.msk [vmem:[%s181] sm:$0xff] %vm481, %v480
      %v483 = vpack.c.bf16 %v465, %v465
      %v484 = vpack.c.bf16 %v467, %v467
      %v487 = vunpack.c.l.b16 %v483
      %v488 = vunpack.c.l.b16 %v484
      %v489 = vpack.c.b16 %v488, %v487
      %491 = vst [vmem:[%s177] sm:$0xff] %v489
      %p492 = scmp.lt.s32.totalorder %s15, 1
      %s493 = scalar_select %p492, %s15, 1
      %s494 = smul.addr %s493, 2
      %s495 = smul.addr %s494, 4
      %s496 = scalar_lea.vmem %s2, %s495
      %p497 = scmp.lt.s32.totalorder %s15, 1
      %s498 = scalar_select %p497, %s15, 1
      %s499 = smul.addr %s498, 8
      %s500 = scalar_lea.vmem %s3, %s499
      // Predicated region
      $region29: #{double_conv.3} parent=27 // pred_check
        %p501 = pneg %p80
      $region30: #{double_conv.3} parent=27 // pred_check_branch
        %503 = sbr.rel (%p501) target = $region32
      $region31: #{double_conv.3} parent=27 // pred_region
        _
      $region32: #{double_conv.3} parent=27 // pred_fallthru
        _
      // Predicated region
      $region33: #{double_conv.3} parent=27 // pred_check
        %p504 = pneg %p106
      $region34: #{double_conv.3} parent=27 // pred_check_branch
        %506 = sbr.rel (%p504) target = $region36
      $region35: #{double_conv.3} parent=27 // pred_region
        _
      $region36: #{double_conv.3} parent=27 // pred_fallthru
        _
    $region28: #{double_conv.3} parent=5 // pred_fallthru
      _
    %p507 = scmp.le.s32.totalorder 2, %s10
    // Predicated region
    $region37: #{double_conv.3} parent=5 // pred_check
      %p508 = pneg %p507
    $region38: #{double_conv.3} parent=5 // pred_check_branch
      %510 = sbr.rel (%p508) target = $region40
    $region39: #{double_conv.3} parent=5 // pred_region
      %s511 = ssub.s32 %s10, 2
      // Predicated region
      $region41: #{double_conv.3} parent=39 // pred_check
        %p512 = pneg %p86
      $region42: #{double_conv.3} parent=39 // pred_check_branch
        %514 = sbr.rel (%p512) target = $region44
      $region43: #{double_conv.3} parent=39 // pred_region
        %p515 = scmp.lt.s32.totalorder %s16, 1
        %s516 = scalar_select %p515, %s16, 1
        %s517 = smul.addr %s516, 2
        %s518 = smul.addr %s517, 4
        %s519 = scalar_lea.vmem %s2, %s518
      $region44: #{double_conv.3} parent=39 // pred_fallthru
        _
      // Predicated region
      $region45: #{double_conv.3} parent=39 // pred_check
        %p520 = pneg %p112
      $region46: #{double_conv.3} parent=39 // pred_check_branch
        %522 = sbr.rel (%p520) target = $region48
      $region47: #{double_conv.3} parent=39 // pred_region
        %p523 = scmp.lt.s32.totalorder %s16, 1
        %s524 = scalar_select %p523, %s16, 1
        %s525 = smul.addr %s524, 8
        %s526 = scalar_lea.vmem %s3, %s525
      $region48: #{double_conv.3} parent=39 // pred_fallthru
        _
    $region40: #{double_conv.3} parent=5 // pred_fallthru
      _
  $region6: #{double_conv.3} parent=0 // loop_footer
    %s14 = sadd.s32 1, %s10
  $region7: #{double_conv.3} parent=0 // loop_footer_branch
    %9 = sbr.rel target = $region3
  $region8: #{double_conv.3} parent=0 // loop_exit
    _

</llo_original>
